<compile_context>
chip_gen: v5e
topology: v5e:2x2
jax: 0.10.0
libtpu: 0.0.40
codegen_flags: <defaults>
</compile_context>

<pallas_src>
import math

import jax
import jax.numpy as jnp
from jax.experimental import pallas as pl
from jax.experimental.pallas import tpu as pltpu


def _make_disc_kernel(hidden, chunk, mxu_dtype=None):
    """Fused kernel body. Batch lives on the LANE axis inside the kernel."""
    n_chunks = hidden // chunk

    def kernel(z_ref, w1_ref, b1_ref, w2_ref, b2_ref, o_ref):
        # (tb, latent) -> (latent, tb): one in-kernel transpose per tile so the
        # batch sits on lanes; hidden under the MXU work of the chunk loop.
        zT = z_ref[...].T
        if mxu_dtype is not None:
            zT = zT.astype(mxu_dtype)
        tb = zT.shape[1]

        acc = jnp.zeros((1, tb), jnp.float32)
        # Static unroll over hidden chunks: each (chunk, tb) activation slab is
        # consumed immediately (bias + ReLU + w2 weighting + sublane reduce),
        # so the full (hidden, tb) h never round-trips VMEM.
        for c in range(n_chunks):
            s = c * chunk
            w1_c = w1_ref[s:s + chunk, :]                    # (chunk, latent)
            if mxu_dtype is not None:
                w1_c = w1_c.astype(mxu_dtype)
            # fc1 chunk on the MXU, f32 accumulation.
            h = jnp.dot(w1_c, zT, preferred_element_type=jnp.float32)
            h = jnp.maximum(h + b1_ref[s:s + chunk, :], 0.0)  # (chunk,1) bcast
            # fc2 contribution: VPU multiply + cross-sublane reduce -> (1, tb).
            acc = acc + jnp.sum(h * w2_ref[s:s + chunk, :], axis=0,
                                keepdims=True)

        o_ref[...] = (acc + b2_ref[0]).astype(o_ref.dtype)

    return kernel


def _round_up(x, m):
    return (x + m - 1) // m * m


def discriminator_forward(z, w1, b1, w2, b2, *, block_b=2048,
                          hidden_chunk=256, use_bf16_matmul=False):
    """Fused Discriminator forward: fc2(relu(fc1(z))).

    z:  (B, latent)       float32
    w1: (hidden, latent)  -- PyTorch fc1.weight layout
    b1: (hidden, 1)       -- fc1.bias as a column
    w2: (hidden, 1)       -- PyTorch fc2.weight transposed
    b2: (1,)              -- fc2.bias (scalar, lives in SMEM)
    returns (B, 1)
    """
    B, latent = z.shape
    hidden = w1.shape[0]

    if hidden % hidden_chunk != 0:
        hidden_chunk = hidden  # fall back to a single slab

    # Batch tiling: lane-dense tiles (multiples of 128), large enough to
    # amortize per-grid-step overhead, and >= 2 tiles when the batch is
    # splittable so both v7x TensorCores get work.
    Bp = _round_up(max(B, 128), 128)
    n_tiles = pl.cdiv(Bp, block_b)
    if n_tiles == 1 and Bp >= 256:
        n_tiles = 2
    tb = _round_up(pl.cdiv(Bp, n_tiles), 128)
    Bp = tb * n_tiles

    if Bp != B:
        # Zero-pad; padded rows compute relu(b1)*w2 + b2 and are sliced off.
        z = jnp.pad(z, ((0, Bp - B), (0, 0)))

    mxu_dtype = jnp.bfloat16 if use_bf16_matmul else None
    kernel = _make_disc_kernel(hidden, hidden_chunk, mxu_dtype)

    flops = 2 * Bp * hidden * (latent + 1)
    bytes_accessed = (Bp * latent * z.dtype.itemsize
                      + w1.size * w1.dtype.itemsize
                      + b1.size * b1.dtype.itemsize
                      + w2.size * w2.dtype.itemsize
                      + b2.size * b2.dtype.itemsize
                      + Bp * z.dtype.itemsize)

    out = pl.pallas_call(
        kernel,
        out_shape=jax.ShapeDtypeStruct((1, Bp), z.dtype),
        grid=(n_tiles,),
        in_specs=[
            # z tiles stream in natural (B, latent) layout -- no HBM transpose.
            pl.BlockSpec((tb, latent), lambda i: (i, 0),
                         memory_space=pltpu.MemorySpace.VMEM),
            # Weights / biases: grid-invariant blocks, stay VMEM-resident.
            pl.BlockSpec((hidden, latent), lambda i: (0, 0),
                         memory_space=pltpu.MemorySpace.VMEM),
            pl.BlockSpec((hidden, 1), lambda i: (0, 0),
                         memory_space=pltpu.MemorySpace.VMEM),
            pl.BlockSpec((hidden, 1), lambda i: (0, 0),
                         memory_space=pltpu.MemorySpace.VMEM),
            pl.BlockSpec(memory_space=pltpu.MemorySpace.SMEM),
        ],
        out_specs=pl.BlockSpec((1, tb), lambda i: (0, i),
                               memory_space=pltpu.MemorySpace.VMEM),
        compiler_params=pltpu.CompilerParams(
            dimension_semantics=("parallel",)),
        cost_estimate=pl.CostEstimate(flops=flops, transcendentals=0,
                                      bytes_accessed=bytes_accessed),
    )(z, w1, b1, w2, b2)

    return out.reshape(Bp, 1)[:B]


def init_discriminator_params(key, latent_dim, hidden_dim, dtype=jnp.float32):
    """Matches nn.Linear default init U(-1/sqrt(fan_in), 1/sqrt(fan_in))."""
    k1, k2, k3, k4 = jax.random.split(key, 4)
    bound1 = 1.0 / math.sqrt(latent_dim)
    bound2 = 1.0 / math.sqrt(hidden_dim)
    w1 = jax.random.uniform(k1, (hidden_dim, latent_dim), dtype, -bound1, bound1)
    b1 = jax.random.uniform(k2, (hidden_dim, 1), dtype, -bound1, bound1)
    w2 = jax.random.uniform(k3, (hidden_dim, 1), dtype, -bound2, bound2)
    b2 = jax.random.uniform(k4, (1,), dtype, -bound2, bound2)
    return w1, b1, w2, b2


def _reference(z, w1, b1, w2, b2):
    hi = jax.lax.Precision.HIGHEST
    h = jnp.maximum(jnp.dot(z, w1.T, precision=hi) + b1.T, 0.0)
    return jnp.dot(h, w2, precision=hi) + b2


if __name__ == "__main__":
    # Module defaults: latent_dim=32, hidden_dim=1024; small batch for the demo.
    B, LATENT, HIDDEN = 8, 32, 1024

    key = jax.random.PRNGKey(0)
    kz, kz2, kp = jax.random.split(key, 3)
    z = jax.random.normal(kz, (B, LATENT), jnp.float32)
    w1, b1, w2, b2 = init_discriminator_params(kp, LATENT, HIDDEN)

    # Small-batch path: pads up to one full 128-lane tile.
    out = jax.block_until_ready(discriminator_forward(z, w1, b1, w2, b2))
    ref = _reference(z, w1, b1, w2, b2)
    assert out.shape == (B, 1)
    assert jnp.allclose(out, ref, atol=1e-4, rtol=1e-4)

    # Multi-tile, padded-batch path (grid of 3 tiles of 128 rows).
    B2 = 300
    z2 = jax.random.normal(kz2, (B2, LATENT), jnp.float32)
    out2 = jax.block_until_ready(
        discriminator_forward(z2, w1, b1, w2, b2, block_b=128))
    ref2 = _reference(z2, w1, b1, w2, b2)
    assert out2.shape == (B2, 1)
    assert jnp.allclose(out2, ref2, atol=1e-4, rtol=1e-4)

    print("KERNEL_OK")
</pallas_src>

<mosaic_0001>
module attributes {stable_mosaic.version = 11 : i64} {
  func.func @kernel(%arg0: i32, %arg1: memref<128x32xf32, #tpu.memory_space<vmem>>, %arg2: memref<1024x32xf32, #tpu.memory_space<vmem>>, %arg3: memref<1024x1xf32, #tpu.memory_space<vmem>>, %arg4: memref<1024x1xf32, #tpu.memory_space<vmem>>, %arg5: memref<1xf32, #tpu.memory_space<smem>>, %arg6: memref<1x128xf32, #tpu.memory_space<vmem>>) attributes {dimension_semantics = [#tpu.dimension_semantics<parallel>], iteration_bounds = array<i64: 1>, scalar_prefetch = 0 : i64, scratch_operands = 0 : i64, tpu.core_type = #tpu.core_type<tc>, window_params = [{transform_indices = @transform_0, window_bounds = array<i64: 128, 32>}, {pipeline_mode = #tpu.pipeline_mode<synchronous>, transform_indices = @transform_1, window_bounds = array<i64: 1024, 32>}, {pipeline_mode = #tpu.pipeline_mode<synchronous>, transform_indices = @transform_2, window_bounds = array<i64: 1024, 1>}, {pipeline_mode = #tpu.pipeline_mode<synchronous>, transform_indices = @transform_3, window_bounds = array<i64: 1024, 1>}, {transform_indices = @transform_4, window_bounds = array<i64: 1>}, {transform_indices = @transform_5, window_bounds = array<i64: 1, 128>}]} {
    %c0 = arith.constant 0 : index
    %c0_0 = arith.constant 0 : index
    %0 = vector.load %arg1[%c0, %c0_0] : memref<128x32xf32, #tpu.memory_space<vmem>>, vector<128x32xf32>
    %1 = tpu.transpose %0, [1, 0] : vector<128x32xf32> -> vector<32x128xf32>
    %cst = arith.constant 0.000000e+00 : f32
    %2 = vector.broadcast %cst : f32 to vector<1x128xf32>
    %c0_1 = arith.constant 0 : index
    %c0_2 = arith.constant 0 : index
    %3 = vector.load %arg2[%c0_1, %c0_2] : memref<1024x32xf32, #tpu.memory_space<vmem>>, vector<256x32xf32>
    %cst_3 = arith.constant dense<0.000000e+00> : vector<256x128xf32>
    %4 = tpu.matmul %3, %1, %cst_3 {dimension_numbers = #tpu.dot_dimension_numbers<[1], [0], [0], [1], [0, 0, 1, 1], [], []>} : vector<256x32xf32>, vector<32x128xf32>, vector<256x128xf32> -> vector<256x128xf32>
    %c0_4 = arith.constant 0 : index
    %c0_5 = arith.constant 0 : index
    %5 = vector.load %arg3[%c0_4, %c0_5] : memref<1024x1xf32, #tpu.memory_space<vmem>>, vector<256x1xf32>
    %6 = vector.broadcast %5 : vector<256x1xf32> to vector<256x128xf32>
    %7 = arith.addf %4, %6 : vector<256x128xf32>
    %cst_6 = arith.constant 0.000000e+00 : f32
    %8 = vector.broadcast %cst_6 : f32 to vector<256x128xf32>
    %9 = arith.maximumf %7, %8 : vector<256x128xf32>
    %c0_7 = arith.constant 0 : index
    %c0_8 = arith.constant 0 : index
    %10 = vector.load %arg4[%c0_7, %c0_8] : memref<1024x1xf32, #tpu.memory_space<vmem>>, vector<256x1xf32>
    %11 = vector.broadcast %10 : vector<256x1xf32> to vector<256x128xf32>
    %12 = arith.mulf %9, %11 : vector<256x128xf32>
    %cst_9 = arith.constant dense<0.000000e+00> : vector<128xf32>
    %13 = vector.multi_reduction <add>, %12, %cst_9 [0] : vector<256x128xf32> to vector<128xf32>
    %14 = vector.shape_cast %13 : vector<128xf32> to vector<1x128xf32>
    %15 = arith.addf %2, %14 : vector<1x128xf32>
    %c256 = arith.constant 256 : index
    %c0_10 = arith.constant 0 : index
    %16 = vector.load %arg2[%c256, %c0_10] : memref<1024x32xf32, #tpu.memory_space<vmem>>, vector<256x32xf32>
    %cst_11 = arith.constant dense<0.000000e+00> : vector<256x128xf32>
    %17 = tpu.matmul %16, %1, %cst_11 {dimension_numbers = #tpu.dot_dimension_numbers<[1], [0], [0], [1], [0, 0, 1, 1], [], []>} : vector<256x32xf32>, vector<32x128xf32>, vector<256x128xf32> -> vector<256x128xf32>
    %c256_12 = arith.constant 256 : index
    %c0_13 = arith.constant 0 : index
    %18 = vector.load %arg3[%c256_12, %c0_13] : memref<1024x1xf32, #tpu.memory_space<vmem>>, vector<256x1xf32>
    %19 = vector.broadcast %18 : vector<256x1xf32> to vector<256x128xf32>
    %20 = arith.addf %17, %19 : vector<256x128xf32>
    %cst_14 = arith.constant 0.000000e+00 : f32
    %21 = vector.broadcast %cst_14 : f32 to vector<256x128xf32>
    %22 = arith.maximumf %20, %21 : vector<256x128xf32>
    %c256_15 = arith.constant 256 : index
    %c0_16 = arith.constant 0 : index
    %23 = vector.load %arg4[%c256_15, %c0_16] : memref<1024x1xf32, #tpu.memory_space<vmem>>, vector<256x1xf32>
    %24 = vector.broadcast %23 : vector<256x1xf32> to vector<256x128xf32>
    %25 = arith.mulf %22, %24 : vector<256x128xf32>
    %cst_17 = arith.constant dense<0.000000e+00> : vector<128xf32>
    %26 = vector.multi_reduction <add>, %25, %cst_17 [0] : vector<256x128xf32> to vector<128xf32>
    %27 = vector.shape_cast %26 : vector<128xf32> to vector<1x128xf32>
    %28 = arith.addf %15, %27 : vector<1x128xf32>
    %c512 = arith.constant 512 : index
    %c0_18 = arith.constant 0 : index
    %29 = vector.load %arg2[%c512, %c0_18] : memref<1024x32xf32, #tpu.memory_space<vmem>>, vector<256x32xf32>
    %cst_19 = arith.constant dense<0.000000e+00> : vector<256x128xf32>
    %30 = tpu.matmul %29, %1, %cst_19 {dimension_numbers = #tpu.dot_dimension_numbers<[1], [0], [0], [1], [0, 0, 1, 1], [], []>} : vector<256x32xf32>, vector<32x128xf32>, vector<256x128xf32> -> vector<256x128xf32>
    %c512_20 = arith.constant 512 : index
    %c0_21 = arith.constant 0 : index
    %31 = vector.load %arg3[%c512_20, %c0_21] : memref<1024x1xf32, #tpu.memory_space<vmem>>, vector<256x1xf32>
    %32 = vector.broadcast %31 : vector<256x1xf32> to vector<256x128xf32>
    %33 = arith.addf %30, %32 : vector<256x128xf32>
    %cst_22 = arith.constant 0.000000e+00 : f32
    %34 = vector.broadcast %cst_22 : f32 to vector<256x128xf32>
    %35 = arith.maximumf %33, %34 : vector<256x128xf32>
    %c512_23 = arith.constant 512 : index
    %c0_24 = arith.constant 0 : index
    %36 = vector.load %arg4[%c512_23, %c0_24] : memref<1024x1xf32, #tpu.memory_space<vmem>>, vector<256x1xf32>
    %37 = vector.broadcast %36 : vector<256x1xf32> to vector<256x128xf32>
    %38 = arith.mulf %35, %37 : vector<256x128xf32>
    %cst_25 = arith.constant dense<0.000000e+00> : vector<128xf32>
    %39 = vector.multi_reduction <add>, %38, %cst_25 [0] : vector<256x128xf32> to vector<128xf32>
    %40 = vector.shape_cast %39 : vector<128xf32> to vector<1x128xf32>
    %41 = arith.addf %28, %40 : vector<1x128xf32>
    %c768 = arith.constant 768 : index
    %c0_26 = arith.constant 0 : index
    %42 = vector.load %arg2[%c768, %c0_26] : memref<1024x32xf32, #tpu.memory_space<vmem>>, vector<256x32xf32>
    %cst_27 = arith.constant dense<0.000000e+00> : vector<256x128xf32>
    %43 = tpu.matmul %42, %1, %cst_27 {dimension_numbers = #tpu.dot_dimension_numbers<[1], [0], [0], [1], [0, 0, 1, 1], [], []>} : vector<256x32xf32>, vector<32x128xf32>, vector<256x128xf32> -> vector<256x128xf32>
    %c768_28 = arith.constant 768 : index
    %c0_29 = arith.constant 0 : index
    %44 = vector.load %arg3[%c768_28, %c0_29] : memref<1024x1xf32, #tpu.memory_space<vmem>>, vector<256x1xf32>
    %45 = vector.broadcast %44 : vector<256x1xf32> to vector<256x128xf32>
    %46 = arith.addf %43, %45 : vector<256x128xf32>
    %cst_30 = arith.constant 0.000000e+00 : f32
    %47 = vector.broadcast %cst_30 : f32 to vector<256x128xf32>
    %48 = arith.maximumf %46, %47 : vector<256x128xf32>
    %c768_31 = arith.constant 768 : index
    %c0_32 = arith.constant 0 : index
    %49 = vector.load %arg4[%c768_31, %c0_32] : memref<1024x1xf32, #tpu.memory_space<vmem>>, vector<256x1xf32>
    %50 = vector.broadcast %49 : vector<256x1xf32> to vector<256x128xf32>
    %51 = arith.mulf %48, %50 : vector<256x128xf32>
    %cst_33 = arith.constant dense<0.000000e+00> : vector<128xf32>
    %52 = vector.multi_reduction <add>, %51, %cst_33 [0] : vector<256x128xf32> to vector<128xf32>
    %53 = vector.shape_cast %52 : vector<128xf32> to vector<1x128xf32>
    %54 = arith.addf %41, %53 : vector<1x128xf32>
    %c0_34 = arith.constant 0 : index
    %55 = memref.load %arg5[%c0_34] : memref<1xf32, #tpu.memory_space<smem>>
    %56 = vector.broadcast %55 : f32 to vector<1x128xf32>
    %57 = arith.addf %54, %56 : vector<1x128xf32>
    %c0_35 = arith.constant 0 : index
    %c0_36 = arith.constant 0 : index
    %58 = vector.load %arg6[%c0_35, %c0_36] : memref<1x128xf32, #tpu.memory_space<vmem>>, vector<1x128xf32>
    tpu.vector_store %arg6[%c0_35, %c0_36], %57 {strides = array<i32>} : memref<1x128xf32, #tpu.memory_space<vmem>>, vector<1x128xf32>,
    return
  }
  func.func @transform_0(%arg0: i32) -> (i32, i32) {
    %c0_i32 = arith.constant 0 : i32
    %c0_i32_0 = arith.constant 0 : i32
    return %arg0, %c0_i32 : i32, i32
  }
  func.func @transform_1(%arg0: i32) -> (i32, i32) {
    %c0_i32 = arith.constant 0 : i32
    %c0_i32_0 = arith.constant 0 : i32
    %c0_i32_1 = arith.constant 0 : i32
    return %c0_i32, %c0_i32_0 : i32, i32
  }
  func.func @transform_2(%arg0: i32) -> (i32, i32) {
    %c0_i32 = arith.constant 0 : i32
    %c0_i32_0 = arith.constant 0 : i32
    %c0_i32_1 = arith.constant 0 : i32
    return %c0_i32, %c0_i32_0 : i32, i32
  }
  func.func @transform_3(%arg0: i32) -> (i32, i32) {
    %c0_i32 = arith.constant 0 : i32
    %c0_i32_0 = arith.constant 0 : i32
    %c0_i32_1 = arith.constant 0 : i32
    return %c0_i32, %c0_i32_0 : i32, i32
  }
  func.func @transform_4(%arg0: i32) -> i32 {
    %c0_i32 = arith.constant 0 : i32
    %c0_i32_0 = arith.constant 0 : i32
    return %c0_i32 : i32
  }
  func.func @transform_5(%arg0: i32) -> (i32, i32) {
    %c0_i32 = arith.constant 0 : i32
    %c0_i32_0 = arith.constant 0 : i32
    return %c0_i32, %arg0 : i32, i32
  }
}

</mosaic_0001>

<llo_original>
// kernel: tpu_custom_call.1
$region0: #{tpu_custom_call.1}
  #allocation0 [shape = 'u32[]', space=smem, size = 0x4, offset = 0x4, fixed_abs, tag = 'smem constant byte address 0x4 - core index']
  #allocation1 [shape = 'u32[72,128]{1,0:T(1,128)}', space=vmem, size = 0x9000, scoped, tag = 'internal scratch']
  #allocation2 [shape = 'f32[1]{0:T(128)S(6)}', space=smem, size = 0x200, scoped, tag = 'scoped memory for tpu_custom_call.1']
  %s0 = inlined_call_operand.vmem [shape: f32[128,32], index: 0, kind: input, shape index: {}]
  %s1 = inlined_call_operand.vmem [shape: f32[1024,32], index: 1, kind: input, shape index: {}]
  %s2 = inlined_call_operand.vmem [shape: f32[1024,1], index: 2, kind: input, shape index: {}]
  %s3 = inlined_call_operand.vmem [shape: f32[1024,1], index: 3, kind: input, shape index: {}]
  %s4 = inlined_call_operand.<no memory space> [shape: f32[1], index: 4, kind: input, shape index: {}]
  %s5 = inlined_call_operand.hbm [shape: f32[1,128], index: 5, kind: output, shape index: {}]
  %s6 = sld [smem:[#allocation0]]
  $region30: #{tpu_custom_call.1} parent=0
    _
  %s8 = ssub.s32 1, %s6
  %s9 = scalar_select 0, %s8, %s6
  %10 = sst [smem:[#allocation2]] %s4
  $region1: #{tpu_custom_call.1} parent=0
    #allocation3 [shape = 'u8[512]{0}', space=vmem, size = 0x400, scoped, tag = 'output window, operand 0, single buffered']
    #allocation4 [shape = 's32[1]{0}', space=sflag, size = 0x4, scoped, tag = 'scoped memory for tpu_custom_call.1']
    %11 = vsyncpa [#allocation4], 0
    // Predicated region
    $region2: #{tpu_custom_call.1} parent=1 // pred_check
      _
    $region3: #{tpu_custom_call.1} parent=1 // pred_check_branch
      %13 = sbr.rel (0) target = $region5
    $region4: #{tpu_custom_call.1} parent=1 // pred_region
      _
    $region5: #{tpu_custom_call.1} parent=1 // pred_fallthru
      _
    // Predicated region
    $region6: #{tpu_custom_call.1} parent=1 // pred_check
      _
    $region7: #{tpu_custom_call.1} parent=1 // pred_check_branch
      %15 = sbr.rel (0) target = $region9
    $region8: #{tpu_custom_call.1} parent=1 // pred_region
      _
    $region9: #{tpu_custom_call.1} parent=1 // pred_fallthru
      _
    // Predicated region
    $region10: #{tpu_custom_call.1} parent=1 // pred_check
      _
    $region11: #{tpu_custom_call.1} parent=1 // pred_check_branch
      %17 = sbr.rel (0) target = $region13
    $region12: #{tpu_custom_call.1} parent=1 // pred_region
      _
    $region13: #{tpu_custom_call.1} parent=1 // pred_fallthru
      _
    // Predicated region
    $region14: #{tpu_custom_call.1} parent=1 // pred_check
      _
    $region15: #{tpu_custom_call.1} parent=1 // pred_check_branch
      %19 = sbr.rel (0) target = $region17
    $region16: #{tpu_custom_call.1} parent=1 // pred_region
      _
    $region17: #{tpu_custom_call.1} parent=1 // pred_fallthru
      _
    // Predicated region
    $region18: #{tpu_custom_call.1} parent=1 // pred_check
      _
    $region19: #{tpu_custom_call.1} parent=1 // pred_check_branch
      %21 = sbr.rel (0) target = $region21
    $region20: #{tpu_custom_call.1} parent=1 // pred_region
      _
    $region21: #{tpu_custom_call.1} parent=1 // pred_fallthru
      _
    %v22 = vld [vmem:[%s0] sm:$0xff]
    %v23 = vld [vmem:[%s0 + $0x8] sm:$0xff]
    %v24 = vld [vmem:[%s0 + $0x10] sm:$0xff]
    %v25 = vld [vmem:[%s0 + $0x18] sm:$0xff]
    %v26 = vld [vmem:[%s0 + $0x20] sm:$0xff]
    %v27 = vld [vmem:[%s0 + $0x28] sm:$0xff]
    %v28 = vld [vmem:[%s0 + $0x30] sm:$0xff]
    %v29 = vld [vmem:[%s0 + $0x38] sm:$0xff]
    %v30 = vld [vmem:[%s0 + $0x40] sm:$0xff]
    %v31 = vld [vmem:[%s0 + $0x48] sm:$0xff]
    %v32 = vld [vmem:[%s0 + $0x50] sm:$0xff]
    %v33 = vld [vmem:[%s0 + $0x58] sm:$0xff]
    %v34 = vld [vmem:[%s0 + $0x60] sm:$0xff]
    %v35 = vld [vmem:[%s0 + $0x68] sm:$0xff]
    %v36 = vld [vmem:[%s0 + $0x70] sm:$0xff]
    %v37 = vld [vmem:[%s0 + $0x78] sm:$0xff]
    %v38 = vld [vmem:[%s1] sm:$0xff]
    %v39 = vld [vmem:[%s1 + $0x8] sm:$0xff]
    %v40 = vld [vmem:[%s1 + $0x10] sm:$0xff]
    %v41 = vld [vmem:[%s1 + $0x18] sm:$0xff]
    %v42 = vld [vmem:[%s1 + $0x20] sm:$0xff]
    %v43 = vld [vmem:[%s1 + $0x28] sm:$0xff]
    %v44 = vld [vmem:[%s1 + $0x30] sm:$0xff]
    %v45 = vld [vmem:[%s1 + $0x38] sm:$0xff]
    %v46 = vld [vmem:[%s1 + $0x40] sm:$0xff]
    %v47 = vld [vmem:[%s1 + $0x48] sm:$0xff]
    %v48 = vld [vmem:[%s1 + $0x50] sm:$0xff]
    %v49 = vld [vmem:[%s1 + $0x58] sm:$0xff]
    %v50 = vld [vmem:[%s1 + $0x60] sm:$0xff]
    %v51 = vld [vmem:[%s1 + $0x68] sm:$0xff]
    %v52 = vld [vmem:[%s1 + $0x70] sm:$0xff]
    %v53 = vld [vmem:[%s1 + $0x78] sm:$0xff]
    %v54 = vld [vmem:[%s1 + $0x80] sm:$0xff]
    %v55 = vld [vmem:[%s1 + $0x88] sm:$0xff]
    %v56 = vld [vmem:[%s1 + $0x90] sm:$0xff]
    %v57 = vld [vmem:[%s1 + $0x98] sm:$0xff]
    %v58 = vld [vmem:[%s1 + $0xa0] sm:$0xff]
    %v59 = vld [vmem:[%s1 + $0xa8] sm:$0xff]
    %v60 = vld [vmem:[%s1 + $0xb0] sm:$0xff]
    %v61 = vld [vmem:[%s1 + $0xb8] sm:$0xff]
    %v62 = vld [vmem:[%s1 + $0xc0] sm:$0xff]
    %v63 = vld [vmem:[%s1 + $0xc8] sm:$0xff]
    %v64 = vld [vmem:[%s1 + $0xd0] sm:$0xff]
    %v65 = vld [vmem:[%s1 + $0xd8] sm:$0xff]
    %v66 = vld [vmem:[%s1 + $0xe0] sm:$0xff]
    %v67 = vld [vmem:[%s1 + $0xe8] sm:$0xff]
    %v68 = vld [vmem:[%s1 + $0xf0] sm:$0xff]
    %v69 = vld [vmem:[%s1 + $0xf8] sm:$0xff]
    %v70 = vld [vmem:[%s2] sm:$0xff]
    %v71 = vld [vmem:[%s2 + $0x8] sm:$0xff]
    %v72 = vld [vmem:[%s2 + $0x10] sm:$0xff]
    %v73 = vld [vmem:[%s2 + $0x18] sm:$0xff]
    %v74 = vld [vmem:[%s2 + $0x20] sm:$0xff]
    %v75 = vld [vmem:[%s2 + $0x28] sm:$0xff]
    %v76 = vld [vmem:[%s2 + $0x30] sm:$0xff]
    %v77 = vld [vmem:[%s2 + $0x38] sm:$0xff]
    %v78 = vld [vmem:[%s2 + $0x40] sm:$0xff]
    %v79 = vld [vmem:[%s2 + $0x48] sm:$0xff]
    %v80 = vld [vmem:[%s2 + $0x50] sm:$0xff]
    %v81 = vld [vmem:[%s2 + $0x58] sm:$0xff]
    %v82 = vld [vmem:[%s2 + $0x60] sm:$0xff]
    %v83 = vld [vmem:[%s2 + $0x68] sm:$0xff]
    %v84 = vld [vmem:[%s2 + $0x70] sm:$0xff]
    %v85 = vld [vmem:[%s2 + $0x78] sm:$0xff]
    %v86 = vld [vmem:[%s2 + $0x80] sm:$0xff]
    %v87 = vld [vmem:[%s2 + $0x88] sm:$0xff]
    %v88 = vld [vmem:[%s2 + $0x90] sm:$0xff]
    %v89 = vld [vmem:[%s2 + $0x98] sm:$0xff]
    %v90 = vld [vmem:[%s2 + $0xa0] sm:$0xff]
    %v91 = vld [vmem:[%s2 + $0xa8] sm:$0xff]
    %v92 = vld [vmem:[%s2 + $0xb0] sm:$0xff]
    %v93 = vld [vmem:[%s2 + $0xb8] sm:$0xff]
    %v94 = vld [vmem:[%s2 + $0xc0] sm:$0xff]
    %v95 = vld [vmem:[%s2 + $0xc8] sm:$0xff]
    %v96 = vld [vmem:[%s2 + $0xd0] sm:$0xff]
    %v97 = vld [vmem:[%s2 + $0xd8] sm:$0xff]
    %v98 = vld [vmem:[%s2 + $0xe0] sm:$0xff]
    %v99 = vld [vmem:[%s2 + $0xe8] sm:$0xff]
    %v100 = vld [vmem:[%s2 + $0xf0] sm:$0xff]
    %v101 = vld [vmem:[%s2 + $0xf8] sm:$0xff]
    %103 = vset.pattern.permute.xlu0 0
    %104 = vperm.xlu0 %103, %v70
    %v105 = vpop.permute.xlu0 %104
    %108 = vset.pattern.permute.xlu0 0
    %109 = vperm.xlu0 %108, %v71
    %v110 = vpop.permute.xlu0 %109
    %113 = vset.pattern.permute.xlu0 0
    %114 = vperm.xlu0 %113, %v72
    %v115 = vpop.permute.xlu0 %114
    %118 = vset.pattern.permute.xlu0 0
    %119 = vperm.xlu0 %118, %v73
    %v120 = vpop.permute.xlu0 %119
    %123 = vset.pattern.permute.xlu0 0
    %124 = vperm.xlu0 %123, %v74
    %v125 = vpop.permute.xlu0 %124
    %128 = vset.pattern.permute.xlu0 0
    %129 = vperm.xlu0 %128, %v75
    %v130 = vpop.permute.xlu0 %129
    %133 = vset.pattern.permute.xlu0 0
    %134 = vperm.xlu0 %133, %v76
    %v135 = vpop.permute.xlu0 %134
    %138 = vset.pattern.permute.xlu0 0
    %139 = vperm.xlu0 %138, %v77
    %v140 = vpop.permute.xlu0 %139
    %143 = vset.pattern.permute.xlu0 0
    %144 = vperm.xlu0 %143, %v78
    %v145 = vpop.permute.xlu0 %144
    %148 = vset.pattern.permute.xlu0 0
    %149 = vperm.xlu0 %148, %v79
    %v150 = vpop.permute.xlu0 %149
    %153 = vset.pattern.permute.xlu0 0
    %154 = vperm.xlu0 %153, %v80
    %v155 = vpop.permute.xlu0 %154
    %158 = vset.pattern.permute.xlu0 0
    %159 = vperm.xlu0 %158, %v81
    %v160 = vpop.permute.xlu0 %159
    %163 = vset.pattern.permute.xlu0 0
    %164 = vperm.xlu0 %163, %v82
    %v165 = vpop.permute.xlu0 %164
    %168 = vset.pattern.permute.xlu0 0
    %169 = vperm.xlu0 %168, %v83
    %v170 = vpop.permute.xlu0 %169
    %173 = vset.pattern.permute.xlu0 0
    %174 = vperm.xlu0 %173, %v84
    %v175 = vpop.permute.xlu0 %174
    %178 = vset.pattern.permute.xlu0 0
    %179 = vperm.xlu0 %178, %v85
    %v180 = vpop.permute.xlu0 %179
    %183 = vset.pattern.permute.xlu0 0
    %184 = vperm.xlu0 %183, %v86
    %v185 = vpop.permute.xlu0 %184
    %188 = vset.pattern.permute.xlu0 0
    %189 = vperm.xlu0 %188, %v87
    %v190 = vpop.permute.xlu0 %189
    %193 = vset.pattern.permute.xlu0 0
    %194 = vperm.xlu0 %193, %v88
    %v195 = vpop.permute.xlu0 %194
    %198 = vset.pattern.permute.xlu0 0
    %199 = vperm.xlu0 %198, %v89
    %v200 = vpop.permute.xlu0 %199
    %203 = vset.pattern.permute.xlu0 0
    %204 = vperm.xlu0 %203, %v90
    %v205 = vpop.permute.xlu0 %204
    %208 = vset.pattern.permute.xlu0 0
    %209 = vperm.xlu0 %208, %v91
    %v210 = vpop.permute.xlu0 %209
    %213 = vset.pattern.permute.xlu0 0
    %214 = vperm.xlu0 %213, %v92
    %v215 = vpop.permute.xlu0 %214
    %218 = vset.pattern.permute.xlu0 0
    %219 = vperm.xlu0 %218, %v93
    %v220 = vpop.permute.xlu0 %219
    %223 = vset.pattern.permute.xlu0 0
    %224 = vperm.xlu0 %223, %v94
    %v225 = vpop.permute.xlu0 %224
    %228 = vset.pattern.permute.xlu0 0
    %229 = vperm.xlu0 %228, %v95
    %v230 = vpop.permute.xlu0 %229
    %233 = vset.pattern.permute.xlu0 0
    %234 = vperm.xlu0 %233, %v96
    %v235 = vpop.permute.xlu0 %234
    %238 = vset.pattern.permute.xlu0 0
    %239 = vperm.xlu0 %238, %v97
    %v240 = vpop.permute.xlu0 %239
    %243 = vset.pattern.permute.xlu0 0
    %244 = vperm.xlu0 %243, %v98
    %v245 = vpop.permute.xlu0 %244
    %248 = vset.pattern.permute.xlu0 0
    %249 = vperm.xlu0 %248, %v99
    %v250 = vpop.permute.xlu0 %249
    %253 = vset.pattern.permute.xlu0 0
    %254 = vperm.xlu0 %253, %v100
    %v255 = vpop.permute.xlu0 %254
    %258 = vset.pattern.permute.xlu0 0
    %259 = vperm.xlu0 %258, %v101
    %v260 = vpop.permute.xlu0 %259
    %vm262 = vcmask 261120
    %v264 = vsel %vm262, %v38, 0
    %v267 = vsel %vm262, %v39, 0
    %v270 = vsel %vm262, %v40, 0
    %v273 = vsel %vm262, %v41, 0
    %v276 = vsel %vm262, %v42, 0
    %v279 = vsel %vm262, %v43, 0
    %v282 = vsel %vm262, %v44, 0
    %v285 = vsel %vm262, %v45, 0
    %v288 = vsel %vm262, %v46, 0
    %v291 = vsel %vm262, %v47, 0
    %v294 = vsel %vm262, %v48, 0
    %v297 = vsel %vm262, %v49, 0
    %v300 = vsel %vm262, %v50, 0
    %v303 = vsel %vm262, %v51, 0
    %v306 = vsel %vm262, %v52, 0
    %v309 = vsel %vm262, %v53, 0
    %v312 = vsel %vm262, %v54, 0
    %v315 = vsel %vm262, %v55, 0
    %v318 = vsel %vm262, %v56, 0
    %v321 = vsel %vm262, %v57, 0
    %v324 = vsel %vm262, %v58, 0
    %v327 = vsel %vm262, %v59, 0
    %v330 = vsel %vm262, %v60, 0
    %v333 = vsel %vm262, %v61, 0
    %v336 = vsel %vm262, %v62, 0
    %v339 = vsel %vm262, %v63, 0
    %v342 = vsel %vm262, %v64, 0
    %v345 = vsel %vm262, %v65, 0
    %v348 = vsel %vm262, %v66, 0
    %v351 = vsel %vm262, %v67, 0
    %v354 = vsel %vm262, %v68, 0
    %v357 = vsel %vm262, %v69, 0
    %v360 = vsel %vm262, %v22, 0
    %v363 = vsel %vm262, %v23, 0
    %v366 = vsel %vm262, %v24, 0
    %v369 = vsel %vm262, %v25, 0
    %v372 = vsel %vm262, %v26, 0
    %v375 = vsel %vm262, %v27, 0
    %v378 = vsel %vm262, %v28, 0
    %v381 = vsel %vm262, %v29, 0
    %v384 = vsel %vm262, %v30, 0
    %v387 = vsel %vm262, %v31, 0
    %v390 = vsel %vm262, %v32, 0
    %v393 = vsel %vm262, %v33, 0
    %v396 = vsel %vm262, %v34, 0
    %v399 = vsel %vm262, %v35, 0
    %v402 = vsel %vm262, %v36, 0
    %v405 = vsel %vm262, %v37, 0
    %407 = vmatpush.xpose.msra.mxu0 %v405
    %408 = vmatpush.xpose.msra.mxu0 %v402
    %409 = vmatpush.xpose.msra.mxu0 %v399
    %410 = vmatpush.xpose.msra.mxu0 %v396
    %411 = vmatpush.xpose.msra.mxu0 %v393
    %412 = vmatpush.xpose.msra.mxu0 %v390
    %413 = vmatpush.xpose.msra.mxu0 %v387
    %414 = vmatpush.xpose.msra.mxu0 %v384
    %415 = vmatpush.xpose.msra.mxu0 %v381
    %416 = vmatpush.xpose.msra.mxu0 %v378
    %417 = vmatpush.xpose.msra.mxu0 %v375
    %418 = vmatpush.xpose.msra.mxu0 %v372
    %419 = vmatpush.xpose.msra.mxu0 %v369
    %420 = vmatpush.xpose.msra.mxu0 %v366
    %421 = vmatpush.xpose.msra.mxu0 %v363
    %422 = vmatpush.xpose.msra.mxu0 %v360
    %423 = vmatmul.f32.gmra.mxu0 %v264
    %v424 = vpop.f32.mrf.mxu0
    %v425 = vadd.f32 %v105, %v424
    %426 = vmatmul.f32.gmra.mxu0 %v267
    %v427 = vpop.f32.mrf.mxu0
    %v428 = vadd.f32 %v110, %v427
    %429 = vmatmul.f32.gmra.mxu0 %v270
    %v430 = vpop.f32.mrf.mxu0
    %v431 = vadd.f32 %v115, %v430
    %432 = vmatmul.f32.gmra.mxu0 %v273
    %v433 = vpop.f32.mrf.mxu0
    %v434 = vadd.f32 %v120, %v433
    %435 = vmatmul.f32.gmra.mxu0 %v276
    %v436 = vpop.f32.mrf.mxu0
    %v437 = vadd.f32 %v125, %v436
    %438 = vmatmul.f32.gmra.mxu0 %v279
    %v439 = vpop.f32.mrf.mxu0
    %v440 = vadd.f32 %v130, %v439
    %441 = vmatmul.f32.gmra.mxu0 %v282
    %v442 = vpop.f32.mrf.mxu0
    %v443 = vadd.f32 %v135, %v442
    %444 = vmatmul.f32.gmra.mxu0 %v285
    %v445 = vpop.f32.mrf.mxu0
    %v446 = vadd.f32 %v140, %v445
    %447 = vmatmul.f32.gmra.mxu0 %v288
    %v448 = vpop.f32.mrf.mxu0
    %v449 = vadd.f32 %v145, %v448
    %450 = vmatmul.f32.gmra.mxu0 %v291
    %v451 = vpop.f32.mrf.mxu0
    %v452 = vadd.f32 %v150, %v451
    %453 = vmatmul.f32.gmra.mxu0 %v294
    %v454 = vpop.f32.mrf.mxu0
    %v455 = vadd.f32 %v155, %v454
    %456 = vmatmul.f32.gmra.mxu0 %v297
    %v457 = vpop.f32.mrf.mxu0
    %v458 = vadd.f32 %v160, %v457
    %459 = vmatmul.f32.gmra.mxu0 %v300
    %v460 = vpop.f32.mrf.mxu0
    %v461 = vadd.f32 %v165, %v460
    %462 = vmatmul.f32.gmra.mxu0 %v303
    %v463 = vpop.f32.mrf.mxu0
    %v464 = vadd.f32 %v170, %v463
    %465 = vmatmul.f32.gmra.mxu0 %v306
    %v466 = vpop.f32.mrf.mxu0
    %v467 = vadd.f32 %v175, %v466
    %468 = vmatmul.f32.gmra.mxu0 %v309
    %v469 = vpop.f32.mrf.mxu0
    %v470 = vadd.f32 %v180, %v469
    %471 = vmatmul.f32.gmra.mxu0 %v312
    %v472 = vpop.f32.mrf.mxu0
    %v473 = vadd.f32 %v185, %v472
    %474 = vmatmul.f32.gmra.mxu0 %v315
    %v475 = vpop.f32.mrf.mxu0
    %v476 = vadd.f32 %v190, %v475
    %477 = vmatmul.f32.gmra.mxu0 %v318
    %v478 = vpop.f32.mrf.mxu0
    %v479 = vadd.f32 %v195, %v478
    %480 = vmatmul.f32.gmra.mxu0 %v321
    %v481 = vpop.f32.mrf.mxu0
    %v482 = vadd.f32 %v200, %v481
    %483 = vmatmul.f32.gmra.mxu0 %v324
    %v484 = vpop.f32.mrf.mxu0
    %v485 = vadd.f32 %v205, %v484
    %486 = vmatmul.f32.gmra.mxu0 %v327
    %v487 = vpop.f32.mrf.mxu0
    %v488 = vadd.f32 %v210, %v487
    %489 = vmatmul.f32.gmra.mxu0 %v330
    %v490 = vpop.f32.mrf.mxu0
    %v491 = vadd.f32 %v215, %v490
    %492 = vmatmul.f32.gmra.mxu0 %v333
    %v493 = vpop.f32.mrf.mxu0
    %v494 = vadd.f32 %v220, %v493
    %495 = vmatmul.f32.gmra.mxu0 %v336
    %v496 = vpop.f32.mrf.mxu0
    %v497 = vadd.f32 %v225, %v496
    %498 = vmatmul.f32.gmra.mxu0 %v339
    %v499 = vpop.f32.mrf.mxu0
    %v500 = vadd.f32 %v230, %v499
    %501 = vmatmul.f32.gmra.mxu0 %v342
    %v502 = vpop.f32.mrf.mxu0
    %v503 = vadd.f32 %v235, %v502
    %504 = vmatmul.f32.gmra.mxu0 %v345
    %v505 = vpop.f32.mrf.mxu0
    %v506 = vadd.f32 %v240, %v505
    %507 = vmatmul.f32.gmra.mxu0 %v348
    %v508 = vpop.f32.mrf.mxu0
    %v509 = vadd.f32 %v245, %v508
    %510 = vmatmul.f32.gmra.mxu0 %v351
    %v511 = vpop.f32.mrf.mxu0
    %v512 = vadd.f32 %v250, %v511
    %513 = vmatmul.f32.gmra.mxu0 %v354
    %v514 = vpop.f32.mrf.mxu0
    %v515 = vadd.f32 %v255, %v514
    %516 = vmatmul.f32.gmra.mxu0 %v357
    %v517 = vpop.f32.mrf.mxu0
    %v518 = vadd.f32 %v260, %v517
    %519 = vdwg.mxu0
    %v520 = vmax.f32 %v425, 0.0
    %v521 = vmax.f32 %v428, 0.0
    %v522 = vmax.f32 %v431, 0.0
    %v523 = vmax.f32 %v434, 0.0
    %v524 = vmax.f32 %v437, 0.0
    %v525 = vmax.f32 %v440, 0.0
    %v526 = vmax.f32 %v443, 0.0
    %v527 = vmax.f32 %v446, 0.0
    %v528 = vmax.f32 %v449, 0.0
    %v529 = vmax.f32 %v452, 0.0
    %v530 = vmax.f32 %v455, 0.0
    %v531 = vmax.f32 %v458, 0.0
    %v532 = vmax.f32 %v461, 0.0
    %v533 = vmax.f32 %v464, 0.0
    %v534 = vmax.f32 %v467, 0.0
    %v535 = vmax.f32 %v470, 0.0
    %v536 = vmax.f32 %v473, 0.0
    %v537 = vmax.f32 %v476, 0.0
    %v538 = vmax.f32 %v479, 0.0
    %v539 = vmax.f32 %v482, 0.0
    %v540 = vmax.f32 %v485, 0.0
    %v541 = vmax.f32 %v488, 0.0
    %v542 = vmax.f32 %v491, 0.0
    %v543 = vmax.f32 %v494, 0.0
    %v544 = vmax.f32 %v497, 0.0
    %v545 = vmax.f32 %v500, 0.0
    %v546 = vmax.f32 %v503, 0.0
    %v547 = vmax.f32 %v506, 0.0
    %v548 = vmax.f32 %v509, 0.0
    %v549 = vmax.f32 %v512, 0.0
    %v550 = vmax.f32 %v515, 0.0
    %v551 = vmax.f32 %v518, 0.0
    %v552 = vld [vmem:[%s3] sm:$0xff]
    %v553 = vld [vmem:[%s3 + $0x8] sm:$0xff]
    %v554 = vld [vmem:[%s3 + $0x10] sm:$0xff]
    %v555 = vld [vmem:[%s3 + $0x18] sm:$0xff]
    %v556 = vld [vmem:[%s3 + $0x20] sm:$0xff]
    %v557 = vld [vmem:[%s3 + $0x28] sm:$0xff]
    %v558 = vld [vmem:[%s3 + $0x30] sm:$0xff]
    %v559 = vld [vmem:[%s3 + $0x38] sm:$0xff]
    %v560 = vld [vmem:[%s3 + $0x40] sm:$0xff]
    %v561 = vld [vmem:[%s3 + $0x48] sm:$0xff]
    %v562 = vld [vmem:[%s3 + $0x50] sm:$0xff]
    %v563 = vld [vmem:[%s3 + $0x58] sm:$0xff]
    %v564 = vld [vmem:[%s3 + $0x60] sm:$0xff]
    %v565 = vld [vmem:[%s3 + $0x68] sm:$0xff]
    %v566 = vld [vmem:[%s3 + $0x70] sm:$0xff]
    %v567 = vld [vmem:[%s3 + $0x78] sm:$0xff]
    %v568 = vld [vmem:[%s3 + $0x80] sm:$0xff]
    %v569 = vld [vmem:[%s3 + $0x88] sm:$0xff]
    %v570 = vld [vmem:[%s3 + $0x90] sm:$0xff]
    %v571 = vld [vmem:[%s3 + $0x98] sm:$0xff]
    %v572 = vld [vmem:[%s3 + $0xa0] sm:$0xff]
    %v573 = vld [vmem:[%s3 + $0xa8] sm:$0xff]
    %v574 = vld [vmem:[%s3 + $0xb0] sm:$0xff]
    %v575 = vld [vmem:[%s3 + $0xb8] sm:$0xff]
    %v576 = vld [vmem:[%s3 + $0xc0] sm:$0xff]
    %v577 = vld [vmem:[%s3 + $0xc8] sm:$0xff]
    %v578 = vld [vmem:[%s3 + $0xd0] sm:$0xff]
    %v579 = vld [vmem:[%s3 + $0xd8] sm:$0xff]
    %v580 = vld [vmem:[%s3 + $0xe0] sm:$0xff]
    %v581 = vld [vmem:[%s3 + $0xe8] sm:$0xff]
    %v582 = vld [vmem:[%s3 + $0xf0] sm:$0xff]
    %v583 = vld [vmem:[%s3 + $0xf8] sm:$0xff]
    %585 = vset.pattern.permute.xlu0 0
    %586 = vperm.xlu0 %585, %v552
    %v587 = vpop.permute.xlu0 %586
    %590 = vset.pattern.permute.xlu0 0
    %591 = vperm.xlu0 %590, %v553
    %v592 = vpop.permute.xlu0 %591
    %595 = vset.pattern.permute.xlu0 0
    %596 = vperm.xlu0 %595, %v554
    %v597 = vpop.permute.xlu0 %596
    %600 = vset.pattern.permute.xlu0 0
    %601 = vperm.xlu0 %600, %v555
    %v602 = vpop.permute.xlu0 %601
    %605 = vset.pattern.permute.xlu0 0
    %606 = vperm.xlu0 %605, %v556
    %v607 = vpop.permute.xlu0 %606
    %610 = vset.pattern.permute.xlu0 0
    %611 = vperm.xlu0 %610, %v557
    %v612 = vpop.permute.xlu0 %611
    %615 = vset.pattern.permute.xlu0 0
    %616 = vperm.xlu0 %615, %v558
    %v617 = vpop.permute.xlu0 %616
    %620 = vset.pattern.permute.xlu0 0
    %621 = vperm.xlu0 %620, %v559
    %v622 = vpop.permute.xlu0 %621
    %625 = vset.pattern.permute.xlu0 0
    %626 = vperm.xlu0 %625, %v560
    %v627 = vpop.permute.xlu0 %626
    %630 = vset.pattern.permute.xlu0 0
    %631 = vperm.xlu0 %630, %v561
    %v632 = vpop.permute.xlu0 %631
    %635 = vset.pattern.permute.xlu0 0
    %636 = vperm.xlu0 %635, %v562
    %v637 = vpop.permute.xlu0 %636
    %640 = vset.pattern.permute.xlu0 0
    %641 = vperm.xlu0 %640, %v563
    %v642 = vpop.permute.xlu0 %641
    %645 = vset.pattern.permute.xlu0 0
    %646 = vperm.xlu0 %645, %v564
    %v647 = vpop.permute.xlu0 %646
    %650 = vset.pattern.permute.xlu0 0
    %651 = vperm.xlu0 %650, %v565
    %v652 = vpop.permute.xlu0 %651
    %655 = vset.pattern.permute.xlu0 0
    %656 = vperm.xlu0 %655, %v566
    %v657 = vpop.permute.xlu0 %656
    %660 = vset.pattern.permute.xlu0 0
    %661 = vperm.xlu0 %660, %v567
    %v662 = vpop.permute.xlu0 %661
    %665 = vset.pattern.permute.xlu0 0
    %666 = vperm.xlu0 %665, %v568
    %v667 = vpop.permute.xlu0 %666
    %670 = vset.pattern.permute.xlu0 0
    %671 = vperm.xlu0 %670, %v569
    %v672 = vpop.permute.xlu0 %671
    %675 = vset.pattern.permute.xlu0 0
    %676 = vperm.xlu0 %675, %v570
    %v677 = vpop.permute.xlu0 %676
    %680 = vset.pattern.permute.xlu0 0
    %681 = vperm.xlu0 %680, %v571
    %v682 = vpop.permute.xlu0 %681
    %685 = vset.pattern.permute.xlu0 0
    %686 = vperm.xlu0 %685, %v572
    %v687 = vpop.permute.xlu0 %686
    %690 = vset.pattern.permute.xlu0 0
    %691 = vperm.xlu0 %690, %v573
    %v692 = vpop.permute.xlu0 %691
    %695 = vset.pattern.permute.xlu0 0
    %696 = vperm.xlu0 %695, %v574
    %v697 = vpop.permute.xlu0 %696
    %700 = vset.pattern.permute.xlu0 0
    %701 = vperm.xlu0 %700, %v575
    %v702 = vpop.permute.xlu0 %701
    %705 = vset.pattern.permute.xlu0 0
    %706 = vperm.xlu0 %705, %v576
    %v707 = vpop.permute.xlu0 %706
    %710 = vset.pattern.permute.xlu0 0
    %711 = vperm.xlu0 %710, %v577
    %v712 = vpop.permute.xlu0 %711
    %715 = vset.pattern.permute.xlu0 0
    %716 = vperm.xlu0 %715, %v578
    %v717 = vpop.permute.xlu0 %716
    %720 = vset.pattern.permute.xlu0 0
    %721 = vperm.xlu0 %720, %v579
    %v722 = vpop.permute.xlu0 %721
    %725 = vset.pattern.permute.xlu0 0
    %726 = vperm.xlu0 %725, %v580
    %v727 = vpop.permute.xlu0 %726
    %730 = vset.pattern.permute.xlu0 0
    %731 = vperm.xlu0 %730, %v581
    %v732 = vpop.permute.xlu0 %731
    %735 = vset.pattern.permute.xlu0 0
    %736 = vperm.xlu0 %735, %v582
    %v737 = vpop.permute.xlu0 %736
    %740 = vset.pattern.permute.xlu0 0
    %741 = vperm.xlu0 %740, %v583
    %v742 = vpop.permute.xlu0 %741
    %v744 = vmul.f32 %v520, %v587
    %v745 = vmul.f32 %v521, %v592
    %v746 = vmul.f32 %v522, %v597
    %v747 = vmul.f32 %v523, %v602
    %v748 = vmul.f32 %v524, %v607
    %v749 = vmul.f32 %v525, %v612
    %v750 = vmul.f32 %v526, %v617
    %v751 = vmul.f32 %v527, %v622
    %v752 = vmul.f32 %v528, %v627
    %v753 = vmul.f32 %v529, %v632
    %v754 = vmul.f32 %v530, %v637
    %v755 = vmul.f32 %v531, %v642
    %v756 = vmul.f32 %v532, %v647
    %v757 = vmul.f32 %v533, %v652
    %v758 = vmul.f32 %v534, %v657
    %v759 = vmul.f32 %v535, %v662
    %v760 = vmul.f32 %v536, %v667
    %v761 = vmul.f32 %v537, %v672
    %v762 = vmul.f32 %v538, %v677
    %v763 = vmul.f32 %v539, %v682
    %v764 = vmul.f32 %v540, %v687
    %v765 = vmul.f32 %v541, %v692
    %v766 = vmul.f32 %v542, %v697
    %v767 = vmul.f32 %v543, %v702
    %v768 = vmul.f32 %v544, %v707
    %v769 = vmul.f32 %v545, %v712
    %v770 = vmul.f32 %v546, %v717
    %v771 = vmul.f32 %v547, %v722
    %v772 = vmul.f32 %v548, %v727
    %v773 = vmul.f32 %v549, %v732
    %v774 = vmul.f32 %v550, %v737
    %v775 = vmul.f32 %v551, %v742
    %v776 = vadd.f32 %v744, %v745
    %v777 = vadd.f32 %v776, %v746
    %v778 = vadd.f32 %v777, %v747
    %v779 = vadd.f32 %v778, %v748
    %v780 = vadd.f32 %v779, %v749
    %v781 = vadd.f32 %v780, %v750
    %v782 = vadd.f32 %v781, %v751
    %v783 = vadd.f32 %v782, %v752
    %v784 = vadd.f32 %v783, %v753
    %v785 = vadd.f32 %v784, %v754
    %v786 = vadd.f32 %v785, %v755
    %v787 = vadd.f32 %v786, %v756
    %v788 = vadd.f32 %v787, %v757
    %v789 = vadd.f32 %v788, %v758
    %v790 = vadd.f32 %v789, %v759
    %v791 = vadd.f32 %v790, %v760
    %v792 = vadd.f32 %v791, %v761
    %v793 = vadd.f32 %v792, %v762
    %v794 = vadd.f32 %v793, %v763
    %v795 = vadd.f32 %v794, %v764
    %v796 = vadd.f32 %v795, %v765
    %v797 = vadd.f32 %v796, %v766
    %v798 = vadd.f32 %v797, %v767
    %v799 = vadd.f32 %v798, %v768
    %v800 = vadd.f32 %v799, %v769
    %v801 = vadd.f32 %v800, %v770
    %v802 = vadd.f32 %v801, %v771
    %v803 = vadd.f32 %v802, %v772
    %v804 = vadd.f32 %v803, %v773
    %v805 = vadd.f32 %v804, %v774
    %v806 = vadd.f32 %v805, %v775
    %v807 = vrot.slane %v806, 4
    %v808 = vadd.f32 %v806, %v807
    %v809 = vrot.slane %v808, 2
    %v810 = vadd.f32 %v808, %v809
    %v811 = vrot.slane %v810, 1
    %v812 = vadd.f32 %v810, %v811
    %v813 = vadd.f32 %v812, 0.0
    %v814 = vld [vmem:[%s1 + $0x100] sm:$0xff]
    %v815 = vld [vmem:[%s1 + $0x108] sm:$0xff]
    %v816 = vld [vmem:[%s1 + $0x110] sm:$0xff]
    %v817 = vld [vmem:[%s1 + $0x118] sm:$0xff]
    %v818 = vld [vmem:[%s1 + $0x120] sm:$0xff]
    %v819 = vld [vmem:[%s1 + $0x128] sm:$0xff]
    %v820 = vld [vmem:[%s1 + $0x130] sm:$0xff]
    %v821 = vld [vmem:[%s1 + $0x138] sm:$0xff]
    %v822 = vld [vmem:[%s1 + $0x140] sm:$0xff]
    %v823 = vld [vmem:[%s1 + $0x148] sm:$0xff]
    %v824 = vld [vmem:[%s1 + $0x150] sm:$0xff]
    %v825 = vld [vmem:[%s1 + $0x158] sm:$0xff]
    %v826 = vld [vmem:[%s1 + $0x160] sm:$0xff]
    %v827 = vld [vmem:[%s1 + $0x168] sm:$0xff]
    %v828 = vld [vmem:[%s1 + $0x170] sm:$0xff]
    %v829 = vld [vmem:[%s1 + $0x178] sm:$0xff]
    %v830 = vld [vmem:[%s1 + $0x180] sm:$0xff]
    %v831 = vld [vmem:[%s1 + $0x188] sm:$0xff]
    %v832 = vld [vmem:[%s1 + $0x190] sm:$0xff]
    %v833 = vld [vmem:[%s1 + $0x198] sm:$0xff]
    %v834 = vld [vmem:[%s1 + $0x1a0] sm:$0xff]
    %v835 = vld [vmem:[%s1 + $0x1a8] sm:$0xff]
    %v836 = vld [vmem:[%s1 + $0x1b0] sm:$0xff]
    %v837 = vld [vmem:[%s1 + $0x1b8] sm:$0xff]
    %v838 = vld [vmem:[%s1 + $0x1c0] sm:$0xff]
    %v839 = vld [vmem:[%s1 + $0x1c8] sm:$0xff]
    %v840 = vld [vmem:[%s1 + $0x1d0] sm:$0xff]
    %v841 = vld [vmem:[%s1 + $0x1d8] sm:$0xff]
    %v842 = vld [vmem:[%s1 + $0x1e0] sm:$0xff]
    %v843 = vld [vmem:[%s1 + $0x1e8] sm:$0xff]
    %v844 = vld [vmem:[%s1 + $0x1f0] sm:$0xff]
    %v845 = vld [vmem:[%s1 + $0x1f8] sm:$0xff]
    %v846 = vld [vmem:[%s2 + $0x100] sm:$0xff]
    %v847 = vld [vmem:[%s2 + $0x108] sm:$0xff]
    %v848 = vld [vmem:[%s2 + $0x110] sm:$0xff]
    %v849 = vld [vmem:[%s2 + $0x118] sm:$0xff]
    %v850 = vld [vmem:[%s2 + $0x120] sm:$0xff]
    %v851 = vld [vmem:[%s2 + $0x128] sm:$0xff]
    %v852 = vld [vmem:[%s2 + $0x130] sm:$0xff]
    %v853 = vld [vmem:[%s2 + $0x138] sm:$0xff]
    %v854 = vld [vmem:[%s2 + $0x140] sm:$0xff]
    %v855 = vld [vmem:[%s2 + $0x148] sm:$0xff]
    %v856 = vld [vmem:[%s2 + $0x150] sm:$0xff]
    %v857 = vld [vmem:[%s2 + $0x158] sm:$0xff]
    %v858 = vld [vmem:[%s2 + $0x160] sm:$0xff]
    %v859 = vld [vmem:[%s2 + $0x168] sm:$0xff]
    %v860 = vld [vmem:[%s2 + $0x170] sm:$0xff]
    %v861 = vld [vmem:[%s2 + $0x178] sm:$0xff]
    %v862 = vld [vmem:[%s2 + $0x180] sm:$0xff]
    %v863 = vld [vmem:[%s2 + $0x188] sm:$0xff]
    %v864 = vld [vmem:[%s2 + $0x190] sm:$0xff]
    %v865 = vld [vmem:[%s2 + $0x198] sm:$0xff]
    %v866 = vld [vmem:[%s2 + $0x1a0] sm:$0xff]
    %v867 = vld [vmem:[%s2 + $0x1a8] sm:$0xff]
    %v868 = vld [vmem:[%s2 + $0x1b0] sm:$0xff]
    %v869 = vld [vmem:[%s2 + $0x1b8] sm:$0xff]
    %v870 = vld [vmem:[%s2 + $0x1c0] sm:$0xff]
    %v871 = vld [vmem:[%s2 + $0x1c8] sm:$0xff]
    %v872 = vld [vmem:[%s2 + $0x1d0] sm:$0xff]
    %v873 = vld [vmem:[%s2 + $0x1d8] sm:$0xff]
    %v874 = vld [vmem:[%s2 + $0x1e0] sm:$0xff]
    %v875 = vld [vmem:[%s2 + $0x1e8] sm:$0xff]
    %v876 = vld [vmem:[%s2 + $0x1f0] sm:$0xff]
    %v877 = vld [vmem:[%s2 + $0x1f8] sm:$0xff]
    %879 = vset.pattern.permute.xlu0 0
    %880 = vperm.xlu0 %879, %v846
    %v881 = vpop.permute.xlu0 %880
    %884 = vset.pattern.permute.xlu0 0
    %885 = vperm.xlu0 %884, %v847
    %v886 = vpop.permute.xlu0 %885
    %889 = vset.pattern.permute.xlu0 0
    %890 = vperm.xlu0 %889, %v848
    %v891 = vpop.permute.xlu0 %890
    %894 = vset.pattern.permute.xlu0 0
    %895 = vperm.xlu0 %894, %v849
    %v896 = vpop.permute.xlu0 %895
    %899 = vset.pattern.permute.xlu0 0
    %900 = vperm.xlu0 %899, %v850
    %v901 = vpop.permute.xlu0 %900
    %904 = vset.pattern.permute.xlu0 0
    %905 = vperm.xlu0 %904, %v851
    %v906 = vpop.permute.xlu0 %905
    %909 = vset.pattern.permute.xlu0 0
    %910 = vperm.xlu0 %909, %v852
    %v911 = vpop.permute.xlu0 %910
    %914 = vset.pattern.permute.xlu0 0
    %915 = vperm.xlu0 %914, %v853
    %v916 = vpop.permute.xlu0 %915
    %919 = vset.pattern.permute.xlu0 0
    %920 = vperm.xlu0 %919, %v854
    %v921 = vpop.permute.xlu0 %920
    %924 = vset.pattern.permute.xlu0 0
    %925 = vperm.xlu0 %924, %v855
    %v926 = vpop.permute.xlu0 %925
    %929 = vset.pattern.permute.xlu0 0
    %930 = vperm.xlu0 %929, %v856
    %v931 = vpop.permute.xlu0 %930
    %934 = vset.pattern.permute.xlu0 0
    %935 = vperm.xlu0 %934, %v857
    %v936 = vpop.permute.xlu0 %935
    %939 = vset.pattern.permute.xlu0 0
    %940 = vperm.xlu0 %939, %v858
    %v941 = vpop.permute.xlu0 %940
    %944 = vset.pattern.permute.xlu0 0
    %945 = vperm.xlu0 %944, %v859
    %v946 = vpop.permute.xlu0 %945
    %949 = vset.pattern.permute.xlu0 0
    %950 = vperm.xlu0 %949, %v860
    %v951 = vpop.permute.xlu0 %950
    %954 = vset.pattern.permute.xlu0 0
    %955 = vperm.xlu0 %954, %v861
    %v956 = vpop.permute.xlu0 %955
    %959 = vset.pattern.permute.xlu0 0
    %960 = vperm.xlu0 %959, %v862
    %v961 = vpop.permute.xlu0 %960
    %964 = vset.pattern.permute.xlu0 0
    %965 = vperm.xlu0 %964, %v863
    %v966 = vpop.permute.xlu0 %965
    %969 = vset.pattern.permute.xlu0 0
    %970 = vperm.xlu0 %969, %v864
    %v971 = vpop.permute.xlu0 %970
    %974 = vset.pattern.permute.xlu0 0
    %975 = vperm.xlu0 %974, %v865
    %v976 = vpop.permute.xlu0 %975
    %979 = vset.pattern.permute.xlu0 0
    %980 = vperm.xlu0 %979, %v866
    %v981 = vpop.permute.xlu0 %980
    %984 = vset.pattern.permute.xlu0 0
    %985 = vperm.xlu0 %984, %v867
    %v986 = vpop.permute.xlu0 %985
    %989 = vset.pattern.permute.xlu0 0
    %990 = vperm.xlu0 %989, %v868
    %v991 = vpop.permute.xlu0 %990
    %994 = vset.pattern.permute.xlu0 0
    %995 = vperm.xlu0 %994, %v869
    %v996 = vpop.permute.xlu0 %995
    %999 = vset.pattern.permute.xlu0 0
    %1000 = vperm.xlu0 %999, %v870
    %v1001 = vpop.permute.xlu0 %1000
    %1004 = vset.pattern.permute.xlu0 0
    %1005 = vperm.xlu0 %1004, %v871
    %v1006 = vpop.permute.xlu0 %1005
    %1009 = vset.pattern.permute.xlu0 0
    %1010 = vperm.xlu0 %1009, %v872
    %v1011 = vpop.permute.xlu0 %1010
    %1014 = vset.pattern.permute.xlu0 0
    %1015 = vperm.xlu0 %1014, %v873
    %v1016 = vpop.permute.xlu0 %1015
    %1019 = vset.pattern.permute.xlu0 0
    %1020 = vperm.xlu0 %1019, %v874
    %v1021 = vpop.permute.xlu0 %1020
    %1024 = vset.pattern.permute.xlu0 0
    %1025 = vperm.xlu0 %1024, %v875
    %v1026 = vpop.permute.xlu0 %1025
    %1029 = vset.pattern.permute.xlu0 0
    %1030 = vperm.xlu0 %1029, %v876
    %v1031 = vpop.permute.xlu0 %1030
    %1034 = vset.pattern.permute.xlu0 0
    %1035 = vperm.xlu0 %1034, %v877
    %v1036 = vpop.permute.xlu0 %1035
    %v1039 = vsel %vm262, %v814, 0
    %v1042 = vsel %vm262, %v815, 0
    %v1045 = vsel %vm262, %v816, 0
    %v1048 = vsel %vm262, %v817, 0
    %v1051 = vsel %vm262, %v818, 0
    %v1054 = vsel %vm262, %v819, 0
    %v1057 = vsel %vm262, %v820, 0
    %v1060 = vsel %vm262, %v821, 0
    %v1063 = vsel %vm262, %v822, 0
    %v1066 = vsel %vm262, %v823, 0
    %v1069 = vsel %vm262, %v824, 0
    %v1072 = vsel %vm262, %v825, 0
    %v1075 = vsel %vm262, %v826, 0
    %v1078 = vsel %vm262, %v827, 0
    %v1081 = vsel %vm262, %v828, 0
    %v1084 = vsel %vm262, %v829, 0
    %v1087 = vsel %vm262, %v830, 0
    %v1090 = vsel %vm262, %v831, 0
    %v1093 = vsel %vm262, %v832, 0
    %v1096 = vsel %vm262, %v833, 0
    %v1099 = vsel %vm262, %v834, 0
    %v1102 = vsel %vm262, %v835, 0
    %v1105 = vsel %vm262, %v836, 0
    %v1108 = vsel %vm262, %v837, 0
    %v1111 = vsel %vm262, %v838, 0
    %v1114 = vsel %vm262, %v839, 0
    %v1117 = vsel %vm262, %v840, 0
    %v1120 = vsel %vm262, %v841, 0
    %v1123 = vsel %vm262, %v842, 0
    %v1126 = vsel %vm262, %v843, 0
    %v1129 = vsel %vm262, %v844, 0
    %v1132 = vsel %vm262, %v845, 0
    %1134 = vmatpush.xpose.msra.mxu0 %v405
    %1135 = vmatpush.xpose.msra.mxu0 %v402
    %1136 = vmatpush.xpose.msra.mxu0 %v399
    %1137 = vmatpush.xpose.msra.mxu0 %v396
    %1138 = vmatpush.xpose.msra.mxu0 %v393
    %1139 = vmatpush.xpose.msra.mxu0 %v390
    %1140 = vmatpush.xpose.msra.mxu0 %v387
    %1141 = vmatpush.xpose.msra.mxu0 %v384
    %1142 = vmatpush.xpose.msra.mxu0 %v381
    %1143 = vmatpush.xpose.msra.mxu0 %v378
    %1144 = vmatpush.xpose.msra.mxu0 %v375
    %1145 = vmatpush.xpose.msra.mxu0 %v372
    %1146 = vmatpush.xpose.msra.mxu0 %v369
    %1147 = vmatpush.xpose.msra.mxu0 %v366
    %1148 = vmatpush.xpose.msra.mxu0 %v363
    %1149 = vmatpush.xpose.msra.mxu0 %v360
    %1150 = vmatmul.f32.gmra.mxu0 %v1039
    %v1151 = vpop.f32.mrf.mxu0
    %v1152 = vadd.f32 %v881, %v1151
    %1153 = vmatmul.f32.gmra.mxu0 %v1042
    %v1154 = vpop.f32.mrf.mxu0
    %v1155 = vadd.f32 %v886, %v1154
    %1156 = vmatmul.f32.gmra.mxu0 %v1045
    %v1157 = vpop.f32.mrf.mxu0
    %v1158 = vadd.f32 %v891, %v1157
    %1159 = vmatmul.f32.gmra.mxu0 %v1048
    %v1160 = vpop.f32.mrf.mxu0
    %v1161 = vadd.f32 %v896, %v1160
    %1162 = vmatmul.f32.gmra.mxu0 %v1051
    %v1163 = vpop.f32.mrf.mxu0
    %v1164 = vadd.f32 %v901, %v1163
    %1165 = vmatmul.f32.gmra.mxu0 %v1054
    %v1166 = vpop.f32.mrf.mxu0
    %v1167 = vadd.f32 %v906, %v1166
    %1168 = vmatmul.f32.gmra.mxu0 %v1057
    %v1169 = vpop.f32.mrf.mxu0
    %v1170 = vadd.f32 %v911, %v1169
    %1171 = vmatmul.f32.gmra.mxu0 %v1060
    %v1172 = vpop.f32.mrf.mxu0
    %v1173 = vadd.f32 %v916, %v1172
    %1174 = vmatmul.f32.gmra.mxu0 %v1063
    %v1175 = vpop.f32.mrf.mxu0
    %v1176 = vadd.f32 %v921, %v1175
    %1177 = vmatmul.f32.gmra.mxu0 %v1066
    %v1178 = vpop.f32.mrf.mxu0
    %v1179 = vadd.f32 %v926, %v1178
    %1180 = vmatmul.f32.gmra.mxu0 %v1069
    %v1181 = vpop.f32.mrf.mxu0
    %v1182 = vadd.f32 %v931, %v1181
    %1183 = vmatmul.f32.gmra.mxu0 %v1072
    %v1184 = vpop.f32.mrf.mxu0
    %v1185 = vadd.f32 %v936, %v1184
    %1186 = vmatmul.f32.gmra.mxu0 %v1075
    %v1187 = vpop.f32.mrf.mxu0
    %v1188 = vadd.f32 %v941, %v1187
    %1189 = vmatmul.f32.gmra.mxu0 %v1078
    %v1190 = vpop.f32.mrf.mxu0
    %v1191 = vadd.f32 %v946, %v1190
    %1192 = vmatmul.f32.gmra.mxu0 %v1081
    %v1193 = vpop.f32.mrf.mxu0
    %v1194 = vadd.f32 %v951, %v1193
    %1195 = vmatmul.f32.gmra.mxu0 %v1084
    %v1196 = vpop.f32.mrf.mxu0
    %v1197 = vadd.f32 %v956, %v1196
    %1198 = vmatmul.f32.gmra.mxu0 %v1087
    %v1199 = vpop.f32.mrf.mxu0
    %v1200 = vadd.f32 %v961, %v1199
    %1201 = vmatmul.f32.gmra.mxu0 %v1090
    %v1202 = vpop.f32.mrf.mxu0
    %v1203 = vadd.f32 %v966, %v1202
    %1204 = vmatmul.f32.gmra.mxu0 %v1093
    %v1205 = vpop.f32.mrf.mxu0
    %v1206 = vadd.f32 %v971, %v1205
    %1207 = vmatmul.f32.gmra.mxu0 %v1096
    %v1208 = vpop.f32.mrf.mxu0
    %v1209 = vadd.f32 %v976, %v1208
    %1210 = vmatmul.f32.gmra.mxu0 %v1099
    %v1211 = vpop.f32.mrf.mxu0
    %v1212 = vadd.f32 %v981, %v1211
    %1213 = vmatmul.f32.gmra.mxu0 %v1102
    %v1214 = vpop.f32.mrf.mxu0
    %v1215 = vadd.f32 %v986, %v1214
    %1216 = vmatmul.f32.gmra.mxu0 %v1105
    %v1217 = vpop.f32.mrf.mxu0
    %v1218 = vadd.f32 %v991, %v1217
    %1219 = vmatmul.f32.gmra.mxu0 %v1108
    %v1220 = vpop.f32.mrf.mxu0
    %v1221 = vadd.f32 %v996, %v1220
    %1222 = vmatmul.f32.gmra.mxu0 %v1111
    %v1223 = vpop.f32.mrf.mxu0
    %v1224 = vadd.f32 %v1001, %v1223
    %1225 = vmatmul.f32.gmra.mxu0 %v1114
    %v1226 = vpop.f32.mrf.mxu0
    %v1227 = vadd.f32 %v1006, %v1226
    %1228 = vmatmul.f32.gmra.mxu0 %v1117
    %v1229 = vpop.f32.mrf.mxu0
    %v1230 = vadd.f32 %v1011, %v1229
    %1231 = vmatmul.f32.gmra.mxu0 %v1120
    %v1232 = vpop.f32.mrf.mxu0
    %v1233 = vadd.f32 %v1016, %v1232
    %1234 = vmatmul.f32.gmra.mxu0 %v1123
    %v1235 = vpop.f32.mrf.mxu0
    %v1236 = vadd.f32 %v1021, %v1235
    %1237 = vmatmul.f32.gmra.mxu0 %v1126
    %v1238 = vpop.f32.mrf.mxu0
    %v1239 = vadd.f32 %v1026, %v1238
    %1240 = vmatmul.f32.gmra.mxu0 %v1129
    %v1241 = vpop.f32.mrf.mxu0
    %v1242 = vadd.f32 %v1031, %v1241
    %1243 = vmatmul.f32.gmra.mxu0 %v1132
    %v1244 = vpop.f32.mrf.mxu0
    %v1245 = vadd.f32 %v1036, %v1244
    %1246 = vdwg.mxu0
    %v1247 = vmax.f32 %v1152, 0.0
    %v1248 = vmax.f32 %v1155, 0.0
    %v1249 = vmax.f32 %v1158, 0.0
    %v1250 = vmax.f32 %v1161, 0.0
    %v1251 = vmax.f32 %v1164, 0.0
    %v1252 = vmax.f32 %v1167, 0.0
    %v1253 = vmax.f32 %v1170, 0.0
    %v1254 = vmax.f32 %v1173, 0.0
    %v1255 = vmax.f32 %v1176, 0.0
    %v1256 = vmax.f32 %v1179, 0.0
    %v1257 = vmax.f32 %v1182, 0.0
    %v1258 = vmax.f32 %v1185, 0.0
    %v1259 = vmax.f32 %v1188, 0.0
    %v1260 = vmax.f32 %v1191, 0.0
    %v1261 = vmax.f32 %v1194, 0.0
    %v1262 = vmax.f32 %v1197, 0.0
    %v1263 = vmax.f32 %v1200, 0.0
    %v1264 = vmax.f32 %v1203, 0.0
    %v1265 = vmax.f32 %v1206, 0.0
    %v1266 = vmax.f32 %v1209, 0.0
    %v1267 = vmax.f32 %v1212, 0.0
    %v1268 = vmax.f32 %v1215, 0.0
    %v1269 = vmax.f32 %v1218, 0.0
    %v1270 = vmax.f32 %v1221, 0.0
    %v1271 = vmax.f32 %v1224, 0.0
    %v1272 = vmax.f32 %v1227, 0.0
    %v1273 = vmax.f32 %v1230, 0.0
    %v1274 = vmax.f32 %v1233, 0.0
    %v1275 = vmax.f32 %v1236, 0.0
    %v1276 = vmax.f32 %v1239, 0.0
    %v1277 = vmax.f32 %v1242, 0.0
    %v1278 = vmax.f32 %v1245, 0.0
    %v1279 = vld [vmem:[%s3 + $0x100] sm:$0xff]
    %v1280 = vld [vmem:[%s3 + $0x108] sm:$0xff]
    %v1281 = vld [vmem:[%s3 + $0x110] sm:$0xff]
    %v1282 = vld [vmem:[%s3 + $0x118] sm:$0xff]
    %v1283 = vld [vmem:[%s3 + $0x120] sm:$0xff]
    %v1284 = vld [vmem:[%s3 + $0x128] sm:$0xff]
    %v1285 = vld [vmem:[%s3 + $0x130] sm:$0xff]
    %v1286 = vld [vmem:[%s3 + $0x138] sm:$0xff]
    %v1287 = vld [vmem:[%s3 + $0x140] sm:$0xff]
    %v1288 = vld [vmem:[%s3 + $0x148] sm:$0xff]
    %v1289 = vld [vmem:[%s3 + $0x150] sm:$0xff]
    %v1290 = vld [vmem:[%s3 + $0x158] sm:$0xff]
    %v1291 = vld [vmem:[%s3 + $0x160] sm:$0xff]
    %v1292 = vld [vmem:[%s3 + $0x168] sm:$0xff]
    %v1293 = vld [vmem:[%s3 + $0x170] sm:$0xff]
    %v1294 = vld [vmem:[%s3 + $0x178] sm:$0xff]
    %v1295 = vld [vmem:[%s3 + $0x180] sm:$0xff]
    %v1296 = vld [vmem:[%s3 + $0x188] sm:$0xff]
    %v1297 = vld [vmem:[%s3 + $0x190] sm:$0xff]
    %v1298 = vld [vmem:[%s3 + $0x198] sm:$0xff]
    %v1299 = vld [vmem:[%s3 + $0x1a0] sm:$0xff]
    %v1300 = vld [vmem:[%s3 + $0x1a8] sm:$0xff]
    %v1301 = vld [vmem:[%s3 + $0x1b0] sm:$0xff]
    %v1302 = vld [vmem:[%s3 + $0x1b8] sm:$0xff]
    %v1303 = vld [vmem:[%s3 + $0x1c0] sm:$0xff]
    %v1304 = vld [vmem:[%s3 + $0x1c8] sm:$0xff]
    %v1305 = vld [vmem:[%s3 + $0x1d0] sm:$0xff]
    %v1306 = vld [vmem:[%s3 + $0x1d8] sm:$0xff]
    %v1307 = vld [vmem:[%s3 + $0x1e0] sm:$0xff]
    %v1308 = vld [vmem:[%s3 + $0x1e8] sm:$0xff]
    %v1309 = vld [vmem:[%s3 + $0x1f0] sm:$0xff]
    %v1310 = vld [vmem:[%s3 + $0x1f8] sm:$0xff]
    %1312 = vset.pattern.permute.xlu0 0
    %1313 = vperm.xlu0 %1312, %v1279
    %v1314 = vpop.permute.xlu0 %1313
    %1317 = vset.pattern.permute.xlu0 0
    %1318 = vperm.xlu0 %1317, %v1280
    %v1319 = vpop.permute.xlu0 %1318
    %1322 = vset.pattern.permute.xlu0 0
    %1323 = vperm.xlu0 %1322, %v1281
    %v1324 = vpop.permute.xlu0 %1323
    %1327 = vset.pattern.permute.xlu0 0
    %1328 = vperm.xlu0 %1327, %v1282
    %v1329 = vpop.permute.xlu0 %1328
    %1332 = vset.pattern.permute.xlu0 0
    %1333 = vperm.xlu0 %1332, %v1283
    %v1334 = vpop.permute.xlu0 %1333
    %1337 = vset.pattern.permute.xlu0 0
    %1338 = vperm.xlu0 %1337, %v1284
    %v1339 = vpop.permute.xlu0 %1338
    %1342 = vset.pattern.permute.xlu0 0
    %1343 = vperm.xlu0 %1342, %v1285
    %v1344 = vpop.permute.xlu0 %1343
    %1347 = vset.pattern.permute.xlu0 0
    %1348 = vperm.xlu0 %1347, %v1286
    %v1349 = vpop.permute.xlu0 %1348
    %1352 = vset.pattern.permute.xlu0 0
    %1353 = vperm.xlu0 %1352, %v1287
    %v1354 = vpop.permute.xlu0 %1353
    %1357 = vset.pattern.permute.xlu0 0
    %1358 = vperm.xlu0 %1357, %v1288
    %v1359 = vpop.permute.xlu0 %1358
    %1362 = vset.pattern.permute.xlu0 0
    %1363 = vperm.xlu0 %1362, %v1289
    %v1364 = vpop.permute.xlu0 %1363
    %1367 = vset.pattern.permute.xlu0 0
    %1368 = vperm.xlu0 %1367, %v1290
    %v1369 = vpop.permute.xlu0 %1368
    %1372 = vset.pattern.permute.xlu0 0
    %1373 = vperm.xlu0 %1372, %v1291
    %v1374 = vpop.permute.xlu0 %1373
    %1377 = vset.pattern.permute.xlu0 0
    %1378 = vperm.xlu0 %1377, %v1292
    %v1379 = vpop.permute.xlu0 %1378
    %1382 = vset.pattern.permute.xlu0 0
    %1383 = vperm.xlu0 %1382, %v1293
    %v1384 = vpop.permute.xlu0 %1383
    %1387 = vset.pattern.permute.xlu0 0
    %1388 = vperm.xlu0 %1387, %v1294
    %v1389 = vpop.permute.xlu0 %1388
    %1392 = vset.pattern.permute.xlu0 0
    %1393 = vperm.xlu0 %1392, %v1295
    %v1394 = vpop.permute.xlu0 %1393
    %1397 = vset.pattern.permute.xlu0 0
    %1398 = vperm.xlu0 %1397, %v1296
    %v1399 = vpop.permute.xlu0 %1398
    %1402 = vset.pattern.permute.xlu0 0
    %1403 = vperm.xlu0 %1402, %v1297
    %v1404 = vpop.permute.xlu0 %1403
    %1407 = vset.pattern.permute.xlu0 0
    %1408 = vperm.xlu0 %1407, %v1298
    %v1409 = vpop.permute.xlu0 %1408
    %1412 = vset.pattern.permute.xlu0 0
    %1413 = vperm.xlu0 %1412, %v1299
    %v1414 = vpop.permute.xlu0 %1413
    %1417 = vset.pattern.permute.xlu0 0
    %1418 = vperm.xlu0 %1417, %v1300
    %v1419 = vpop.permute.xlu0 %1418
    %1422 = vset.pattern.permute.xlu0 0
    %1423 = vperm.xlu0 %1422, %v1301
    %v1424 = vpop.permute.xlu0 %1423
    %1427 = vset.pattern.permute.xlu0 0
    %1428 = vperm.xlu0 %1427, %v1302
    %v1429 = vpop.permute.xlu0 %1428
    %1432 = vset.pattern.permute.xlu0 0
    %1433 = vperm.xlu0 %1432, %v1303
    %v1434 = vpop.permute.xlu0 %1433
    %1437 = vset.pattern.permute.xlu0 0
    %1438 = vperm.xlu0 %1437, %v1304
    %v1439 = vpop.permute.xlu0 %1438
    %1442 = vset.pattern.permute.xlu0 0
    %1443 = vperm.xlu0 %1442, %v1305
    %v1444 = vpop.permute.xlu0 %1443
    %1447 = vset.pattern.permute.xlu0 0
    %1448 = vperm.xlu0 %1447, %v1306
    %v1449 = vpop.permute.xlu0 %1448
    %1452 = vset.pattern.permute.xlu0 0
    %1453 = vperm.xlu0 %1452, %v1307
    %v1454 = vpop.permute.xlu0 %1453
    %1457 = vset.pattern.permute.xlu0 0
    %1458 = vperm.xlu0 %1457, %v1308
    %v1459 = vpop.permute.xlu0 %1458
    %1462 = vset.pattern.permute.xlu0 0
    %1463 = vperm.xlu0 %1462, %v1309
    %v1464 = vpop.permute.xlu0 %1463
    %1467 = vset.pattern.permute.xlu0 0
    %1468 = vperm.xlu0 %1467, %v1310
    %v1469 = vpop.permute.xlu0 %1468
    %v1471 = vmul.f32 %v1247, %v1314
    %v1472 = vmul.f32 %v1248, %v1319
    %v1473 = vmul.f32 %v1249, %v1324
    %v1474 = vmul.f32 %v1250, %v1329
    %v1475 = vmul.f32 %v1251, %v1334
    %v1476 = vmul.f32 %v1252, %v1339
    %v1477 = vmul.f32 %v1253, %v1344
    %v1478 = vmul.f32 %v1254, %v1349
    %v1479 = vmul.f32 %v1255, %v1354
    %v1480 = vmul.f32 %v1256, %v1359
    %v1481 = vmul.f32 %v1257, %v1364
    %v1482 = vmul.f32 %v1258, %v1369
    %v1483 = vmul.f32 %v1259, %v1374
    %v1484 = vmul.f32 %v1260, %v1379
    %v1485 = vmul.f32 %v1261, %v1384
    %v1486 = vmul.f32 %v1262, %v1389
    %v1487 = vmul.f32 %v1263, %v1394
    %v1488 = vmul.f32 %v1264, %v1399
    %v1489 = vmul.f32 %v1265, %v1404
    %v1490 = vmul.f32 %v1266, %v1409
    %v1491 = vmul.f32 %v1267, %v1414
    %v1492 = vmul.f32 %v1268, %v1419
    %v1493 = vmul.f32 %v1269, %v1424
    %v1494 = vmul.f32 %v1270, %v1429
    %v1495 = vmul.f32 %v1271, %v1434
    %v1496 = vmul.f32 %v1272, %v1439
    %v1497 = vmul.f32 %v1273, %v1444
    %v1498 = vmul.f32 %v1274, %v1449
    %v1499 = vmul.f32 %v1275, %v1454
    %v1500 = vmul.f32 %v1276, %v1459
    %v1501 = vmul.f32 %v1277, %v1464
    %v1502 = vmul.f32 %v1278, %v1469
    %v1503 = vadd.f32 %v1471, %v1472
    %v1504 = vadd.f32 %v1503, %v1473
    %v1505 = vadd.f32 %v1504, %v1474
    %v1506 = vadd.f32 %v1505, %v1475
    %v1507 = vadd.f32 %v1506, %v1476
    %v1508 = vadd.f32 %v1507, %v1477
    %v1509 = vadd.f32 %v1508, %v1478
    %v1510 = vadd.f32 %v1509, %v1479
    %v1511 = vadd.f32 %v1510, %v1480
    %v1512 = vadd.f32 %v1511, %v1481
    %v1513 = vadd.f32 %v1512, %v1482
    %v1514 = vadd.f32 %v1513, %v1483
    %v1515 = vadd.f32 %v1514, %v1484
    %v1516 = vadd.f32 %v1515, %v1485
    %v1517 = vadd.f32 %v1516, %v1486
    %v1518 = vadd.f32 %v1517, %v1487
    %v1519 = vadd.f32 %v1518, %v1488
    %v1520 = vadd.f32 %v1519, %v1489
    %v1521 = vadd.f32 %v1520, %v1490
    %v1522 = vadd.f32 %v1521, %v1491
    %v1523 = vadd.f32 %v1522, %v1492
    %v1524 = vadd.f32 %v1523, %v1493
    %v1525 = vadd.f32 %v1524, %v1494
    %v1526 = vadd.f32 %v1525, %v1495
    %v1527 = vadd.f32 %v1526, %v1496
    %v1528 = vadd.f32 %v1527, %v1497
    %v1529 = vadd.f32 %v1528, %v1498
    %v1530 = vadd.f32 %v1529, %v1499
    %v1531 = vadd.f32 %v1530, %v1500
    %v1532 = vadd.f32 %v1531, %v1501
    %v1533 = vadd.f32 %v1532, %v1502
    %v1534 = vrot.slane %v1533, 4
    %v1535 = vadd.f32 %v1533, %v1534
    %v1536 = vrot.slane %v1535, 2
    %v1537 = vadd.f32 %v1535, %v1536
    %v1538 = vrot.slane %v1537, 1
    %v1539 = vadd.f32 %v1537, %v1538
    %v1540 = vadd.f32 %v813, %v1539
    %v1541 = vld [vmem:[%s1 + $0x200] sm:$0xff]
    %v1542 = vld [vmem:[%s1 + $0x208] sm:$0xff]
    %v1543 = vld [vmem:[%s1 + $0x210] sm:$0xff]
    %v1544 = vld [vmem:[%s1 + $0x218] sm:$0xff]
    %v1545 = vld [vmem:[%s1 + $0x220] sm:$0xff]
    %v1546 = vld [vmem:[%s1 + $0x228] sm:$0xff]
    %v1547 = vld [vmem:[%s1 + $0x230] sm:$0xff]
    %v1548 = vld [vmem:[%s1 + $0x238] sm:$0xff]
    %v1549 = vld [vmem:[%s1 + $0x240] sm:$0xff]
    %v1550 = vld [vmem:[%s1 + $0x248] sm:$0xff]
    %v1551 = vld [vmem:[%s1 + $0x250] sm:$0xff]
    %v1552 = vld [vmem:[%s1 + $0x258] sm:$0xff]
    %v1553 = vld [vmem:[%s1 + $0x260] sm:$0xff]
    %v1554 = vld [vmem:[%s1 + $0x268] sm:$0xff]
    %v1555 = vld [vmem:[%s1 + $0x270] sm:$0xff]
    %v1556 = vld [vmem:[%s1 + $0x278] sm:$0xff]
    %v1557 = vld [vmem:[%s1 + $0x280] sm:$0xff]
    %v1558 = vld [vmem:[%s1 + $0x288] sm:$0xff]
    %v1559 = vld [vmem:[%s1 + $0x290] sm:$0xff]
    %v1560 = vld [vmem:[%s1 + $0x298] sm:$0xff]
    %v1561 = vld [vmem:[%s1 + $0x2a0] sm:$0xff]
    %v1562 = vld [vmem:[%s1 + $0x2a8] sm:$0xff]
    %v1563 = vld [vmem:[%s1 + $0x2b0] sm:$0xff]
    %v1564 = vld [vmem:[%s1 + $0x2b8] sm:$0xff]
    %v1565 = vld [vmem:[%s1 + $0x2c0] sm:$0xff]
    %v1566 = vld [vmem:[%s1 + $0x2c8] sm:$0xff]
    %v1567 = vld [vmem:[%s1 + $0x2d0] sm:$0xff]
    %v1568 = vld [vmem:[%s1 + $0x2d8] sm:$0xff]
    %v1569 = vld [vmem:[%s1 + $0x2e0] sm:$0xff]
    %v1570 = vld [vmem:[%s1 + $0x2e8] sm:$0xff]
    %v1571 = vld [vmem:[%s1 + $0x2f0] sm:$0xff]
    %v1572 = vld [vmem:[%s1 + $0x2f8] sm:$0xff]
    %v1573 = vld [vmem:[%s2 + $0x200] sm:$0xff]
    %v1574 = vld [vmem:[%s2 + $0x208] sm:$0xff]
    %v1575 = vld [vmem:[%s2 + $0x210] sm:$0xff]
    %v1576 = vld [vmem:[%s2 + $0x218] sm:$0xff]
    %v1577 = vld [vmem:[%s2 + $0x220] sm:$0xff]
    %v1578 = vld [vmem:[%s2 + $0x228] sm:$0xff]
    %v1579 = vld [vmem:[%s2 + $0x230] sm:$0xff]
    %v1580 = vld [vmem:[%s2 + $0x238] sm:$0xff]
    %v1581 = vld [vmem:[%s2 + $0x240] sm:$0xff]
    %v1582 = vld [vmem:[%s2 + $0x248] sm:$0xff]
    %v1583 = vld [vmem:[%s2 + $0x250] sm:$0xff]
    %v1584 = vld [vmem:[%s2 + $0x258] sm:$0xff]
    %v1585 = vld [vmem:[%s2 + $0x260] sm:$0xff]
    %v1586 = vld [vmem:[%s2 + $0x268] sm:$0xff]
    %v1587 = vld [vmem:[%s2 + $0x270] sm:$0xff]
    %v1588 = vld [vmem:[%s2 + $0x278] sm:$0xff]
    %v1589 = vld [vmem:[%s2 + $0x280] sm:$0xff]
    %v1590 = vld [vmem:[%s2 + $0x288] sm:$0xff]
    %v1591 = vld [vmem:[%s2 + $0x290] sm:$0xff]
    %v1592 = vld [vmem:[%s2 + $0x298] sm:$0xff]
    %v1593 = vld [vmem:[%s2 + $0x2a0] sm:$0xff]
    %v1594 = vld [vmem:[%s2 + $0x2a8] sm:$0xff]
    %v1595 = vld [vmem:[%s2 + $0x2b0] sm:$0xff]
    %v1596 = vld [vmem:[%s2 + $0x2b8] sm:$0xff]
    %v1597 = vld [vmem:[%s2 + $0x2c0] sm:$0xff]
    %v1598 = vld [vmem:[%s2 + $0x2c8] sm:$0xff]
    %v1599 = vld [vmem:[%s2 + $0x2d0] sm:$0xff]
    %v1600 = vld [vmem:[%s2 + $0x2d8] sm:$0xff]
    %v1601 = vld [vmem:[%s2 + $0x2e0] sm:$0xff]
    %v1602 = vld [vmem:[%s2 + $0x2e8] sm:$0xff]
    %v1603 = vld [vmem:[%s2 + $0x2f0] sm:$0xff]
    %v1604 = vld [vmem:[%s2 + $0x2f8] sm:$0xff]
    %1606 = vset.pattern.permute.xlu0 0
    %1607 = vperm.xlu0 %1606, %v1573
    %v1608 = vpop.permute.xlu0 %1607
    %1611 = vset.pattern.permute.xlu0 0
    %1612 = vperm.xlu0 %1611, %v1574
    %v1613 = vpop.permute.xlu0 %1612
    %1616 = vset.pattern.permute.xlu0 0
    %1617 = vperm.xlu0 %1616, %v1575
    %v1618 = vpop.permute.xlu0 %1617
    %1621 = vset.pattern.permute.xlu0 0
    %1622 = vperm.xlu0 %1621, %v1576
    %v1623 = vpop.permute.xlu0 %1622
    %1626 = vset.pattern.permute.xlu0 0
    %1627 = vperm.xlu0 %1626, %v1577
    %v1628 = vpop.permute.xlu0 %1627
    %1631 = vset.pattern.permute.xlu0 0
    %1632 = vperm.xlu0 %1631, %v1578
    %v1633 = vpop.permute.xlu0 %1632
    %1636 = vset.pattern.permute.xlu0 0
    %1637 = vperm.xlu0 %1636, %v1579
    %v1638 = vpop.permute.xlu0 %1637
    %1641 = vset.pattern.permute.xlu0 0
    %1642 = vperm.xlu0 %1641, %v1580
    %v1643 = vpop.permute.xlu0 %1642
    %1646 = vset.pattern.permute.xlu0 0
    %1647 = vperm.xlu0 %1646, %v1581
    %v1648 = vpop.permute.xlu0 %1647
    %1651 = vset.pattern.permute.xlu0 0
    %1652 = vperm.xlu0 %1651, %v1582
    %v1653 = vpop.permute.xlu0 %1652
    %1656 = vset.pattern.permute.xlu0 0
    %1657 = vperm.xlu0 %1656, %v1583
    %v1658 = vpop.permute.xlu0 %1657
    %1661 = vset.pattern.permute.xlu0 0
    %1662 = vperm.xlu0 %1661, %v1584
    %v1663 = vpop.permute.xlu0 %1662
    %1666 = vset.pattern.permute.xlu0 0
    %1667 = vperm.xlu0 %1666, %v1585
    %v1668 = vpop.permute.xlu0 %1667
    %1671 = vset.pattern.permute.xlu0 0
    %1672 = vperm.xlu0 %1671, %v1586
    %v1673 = vpop.permute.xlu0 %1672
    %1676 = vset.pattern.permute.xlu0 0
    %1677 = vperm.xlu0 %1676, %v1587
    %v1678 = vpop.permute.xlu0 %1677
    %1681 = vset.pattern.permute.xlu0 0
    %1682 = vperm.xlu0 %1681, %v1588
    %v1683 = vpop.permute.xlu0 %1682
    %1686 = vset.pattern.permute.xlu0 0
    %1687 = vperm.xlu0 %1686, %v1589
    %v1688 = vpop.permute.xlu0 %1687
    %1691 = vset.pattern.permute.xlu0 0
    %1692 = vperm.xlu0 %1691, %v1590
    %v1693 = vpop.permute.xlu0 %1692
    %1696 = vset.pattern.permute.xlu0 0
    %1697 = vperm.xlu0 %1696, %v1591
    %v1698 = vpop.permute.xlu0 %1697
    %1701 = vset.pattern.permute.xlu0 0
    %1702 = vperm.xlu0 %1701, %v1592
    %v1703 = vpop.permute.xlu0 %1702
    %1706 = vset.pattern.permute.xlu0 0
    %1707 = vperm.xlu0 %1706, %v1593
    %v1708 = vpop.permute.xlu0 %1707
    %1711 = vset.pattern.permute.xlu0 0
    %1712 = vperm.xlu0 %1711, %v1594
    %v1713 = vpop.permute.xlu0 %1712
    %1716 = vset.pattern.permute.xlu0 0
    %1717 = vperm.xlu0 %1716, %v1595
    %v1718 = vpop.permute.xlu0 %1717
    %1721 = vset.pattern.permute.xlu0 0
    %1722 = vperm.xlu0 %1721, %v1596
    %v1723 = vpop.permute.xlu0 %1722
    %1726 = vset.pattern.permute.xlu0 0
    %1727 = vperm.xlu0 %1726, %v1597
    %v1728 = vpop.permute.xlu0 %1727
    %1731 = vset.pattern.permute.xlu0 0
    %1732 = vperm.xlu0 %1731, %v1598
    %v1733 = vpop.permute.xlu0 %1732
    %1736 = vset.pattern.permute.xlu0 0
    %1737 = vperm.xlu0 %1736, %v1599
    %v1738 = vpop.permute.xlu0 %1737
    %1741 = vset.pattern.permute.xlu0 0
    %1742 = vperm.xlu0 %1741, %v1600
    %v1743 = vpop.permute.xlu0 %1742
    %1746 = vset.pattern.permute.xlu0 0
    %1747 = vperm.xlu0 %1746, %v1601
    %v1748 = vpop.permute.xlu0 %1747
    %1751 = vset.pattern.permute.xlu0 0
    %1752 = vperm.xlu0 %1751, %v1602
    %v1753 = vpop.permute.xlu0 %1752
    %1756 = vset.pattern.permute.xlu0 0
    %1757 = vperm.xlu0 %1756, %v1603
    %v1758 = vpop.permute.xlu0 %1757
    %1761 = vset.pattern.permute.xlu0 0
    %1762 = vperm.xlu0 %1761, %v1604
    %v1763 = vpop.permute.xlu0 %1762
    %v1766 = vsel %vm262, %v1541, 0
    %v1769 = vsel %vm262, %v1542, 0
    %v1772 = vsel %vm262, %v1543, 0
    %v1775 = vsel %vm262, %v1544, 0
    %v1778 = vsel %vm262, %v1545, 0
    %v1781 = vsel %vm262, %v1546, 0
    %v1784 = vsel %vm262, %v1547, 0
    %v1787 = vsel %vm262, %v1548, 0
    %v1790 = vsel %vm262, %v1549, 0
    %v1793 = vsel %vm262, %v1550, 0
    %v1796 = vsel %vm262, %v1551, 0
    %v1799 = vsel %vm262, %v1552, 0
    %v1802 = vsel %vm262, %v1553, 0
    %v1805 = vsel %vm262, %v1554, 0
    %v1808 = vsel %vm262, %v1555, 0
    %v1811 = vsel %vm262, %v1556, 0
    %v1814 = vsel %vm262, %v1557, 0
    %v1817 = vsel %vm262, %v1558, 0
    %v1820 = vsel %vm262, %v1559, 0
    %v1823 = vsel %vm262, %v1560, 0
    %v1826 = vsel %vm262, %v1561, 0
    %v1829 = vsel %vm262, %v1562, 0
    %v1832 = vsel %vm262, %v1563, 0
    %v1835 = vsel %vm262, %v1564, 0
    %v1838 = vsel %vm262, %v1565, 0
    %v1841 = vsel %vm262, %v1566, 0
    %v1844 = vsel %vm262, %v1567, 0
    %v1847 = vsel %vm262, %v1568, 0
    %v1850 = vsel %vm262, %v1569, 0
    %v1853 = vsel %vm262, %v1570, 0
    %v1856 = vsel %vm262, %v1571, 0
    %v1859 = vsel %vm262, %v1572, 0
    %1861 = vmatpush.xpose.msra.mxu0 %v405
    %1862 = vmatpush.xpose.msra.mxu0 %v402
    %1863 = vmatpush.xpose.msra.mxu0 %v399
    %1864 = vmatpush.xpose.msra.mxu0 %v396
    %1865 = vmatpush.xpose.msra.mxu0 %v393
    %1866 = vmatpush.xpose.msra.mxu0 %v390
    %1867 = vmatpush.xpose.msra.mxu0 %v387
    %1868 = vmatpush.xpose.msra.mxu0 %v384
    %1869 = vmatpush.xpose.msra.mxu0 %v381
    %1870 = vmatpush.xpose.msra.mxu0 %v378
    %1871 = vmatpush.xpose.msra.mxu0 %v375
    %1872 = vmatpush.xpose.msra.mxu0 %v372
    %1873 = vmatpush.xpose.msra.mxu0 %v369
    %1874 = vmatpush.xpose.msra.mxu0 %v366
    %1875 = vmatpush.xpose.msra.mxu0 %v363
    %1876 = vmatpush.xpose.msra.mxu0 %v360
    %1877 = vmatmul.f32.gmra.mxu0 %v1766
    %v1878 = vpop.f32.mrf.mxu0
    %v1879 = vadd.f32 %v1608, %v1878
    %1880 = vmatmul.f32.gmra.mxu0 %v1769
    %v1881 = vpop.f32.mrf.mxu0
    %v1882 = vadd.f32 %v1613, %v1881
    %1883 = vmatmul.f32.gmra.mxu0 %v1772
    %v1884 = vpop.f32.mrf.mxu0
    %v1885 = vadd.f32 %v1618, %v1884
    %1886 = vmatmul.f32.gmra.mxu0 %v1775
    %v1887 = vpop.f32.mrf.mxu0
    %v1888 = vadd.f32 %v1623, %v1887
    %1889 = vmatmul.f32.gmra.mxu0 %v1778
    %v1890 = vpop.f32.mrf.mxu0
    %v1891 = vadd.f32 %v1628, %v1890
    %1892 = vmatmul.f32.gmra.mxu0 %v1781
    %v1893 = vpop.f32.mrf.mxu0
    %v1894 = vadd.f32 %v1633, %v1893
    %1895 = vmatmul.f32.gmra.mxu0 %v1784
    %v1896 = vpop.f32.mrf.mxu0
    %v1897 = vadd.f32 %v1638, %v1896
    %1898 = vmatmul.f32.gmra.mxu0 %v1787
    %v1899 = vpop.f32.mrf.mxu0
    %v1900 = vadd.f32 %v1643, %v1899
    %1901 = vmatmul.f32.gmra.mxu0 %v1790
    %v1902 = vpop.f32.mrf.mxu0
    %v1903 = vadd.f32 %v1648, %v1902
    %1904 = vmatmul.f32.gmra.mxu0 %v1793
    %v1905 = vpop.f32.mrf.mxu0
    %v1906 = vadd.f32 %v1653, %v1905
    %1907 = vmatmul.f32.gmra.mxu0 %v1796
    %v1908 = vpop.f32.mrf.mxu0
    %v1909 = vadd.f32 %v1658, %v1908
    %1910 = vmatmul.f32.gmra.mxu0 %v1799
    %v1911 = vpop.f32.mrf.mxu0
    %v1912 = vadd.f32 %v1663, %v1911
    %1913 = vmatmul.f32.gmra.mxu0 %v1802
    %v1914 = vpop.f32.mrf.mxu0
    %v1915 = vadd.f32 %v1668, %v1914
    %1916 = vmatmul.f32.gmra.mxu0 %v1805
    %v1917 = vpop.f32.mrf.mxu0
    %v1918 = vadd.f32 %v1673, %v1917
    %1919 = vmatmul.f32.gmra.mxu0 %v1808
    %v1920 = vpop.f32.mrf.mxu0
    %v1921 = vadd.f32 %v1678, %v1920
    %1922 = vmatmul.f32.gmra.mxu0 %v1811
    %v1923 = vpop.f32.mrf.mxu0
    %v1924 = vadd.f32 %v1683, %v1923
    %1925 = vmatmul.f32.gmra.mxu0 %v1814
    %v1926 = vpop.f32.mrf.mxu0
    %v1927 = vadd.f32 %v1688, %v1926
    %1928 = vmatmul.f32.gmra.mxu0 %v1817
    %v1929 = vpop.f32.mrf.mxu0
    %v1930 = vadd.f32 %v1693, %v1929
    %1931 = vmatmul.f32.gmra.mxu0 %v1820
    %v1932 = vpop.f32.mrf.mxu0
    %v1933 = vadd.f32 %v1698, %v1932
    %1934 = vmatmul.f32.gmra.mxu0 %v1823
    %v1935 = vpop.f32.mrf.mxu0
    %v1936 = vadd.f32 %v1703, %v1935
    %1937 = vmatmul.f32.gmra.mxu0 %v1826
    %v1938 = vpop.f32.mrf.mxu0
    %v1939 = vadd.f32 %v1708, %v1938
    %1940 = vmatmul.f32.gmra.mxu0 %v1829
    %v1941 = vpop.f32.mrf.mxu0
    %v1942 = vadd.f32 %v1713, %v1941
    %1943 = vmatmul.f32.gmra.mxu0 %v1832
    %v1944 = vpop.f32.mrf.mxu0
    %v1945 = vadd.f32 %v1718, %v1944
    %1946 = vmatmul.f32.gmra.mxu0 %v1835
    %v1947 = vpop.f32.mrf.mxu0
    %v1948 = vadd.f32 %v1723, %v1947
    %1949 = vmatmul.f32.gmra.mxu0 %v1838
    %v1950 = vpop.f32.mrf.mxu0
    %v1951 = vadd.f32 %v1728, %v1950
    %1952 = vmatmul.f32.gmra.mxu0 %v1841
    %v1953 = vpop.f32.mrf.mxu0
    %v1954 = vadd.f32 %v1733, %v1953
    %1955 = vmatmul.f32.gmra.mxu0 %v1844
    %v1956 = vpop.f32.mrf.mxu0
    %v1957 = vadd.f32 %v1738, %v1956
    %1958 = vmatmul.f32.gmra.mxu0 %v1847
    %v1959 = vpop.f32.mrf.mxu0
    %v1960 = vadd.f32 %v1743, %v1959
    %1961 = vmatmul.f32.gmra.mxu0 %v1850
    %v1962 = vpop.f32.mrf.mxu0
    %v1963 = vadd.f32 %v1748, %v1962
    %1964 = vmatmul.f32.gmra.mxu0 %v1853
    %v1965 = vpop.f32.mrf.mxu0
    %v1966 = vadd.f32 %v1753, %v1965
    %1967 = vmatmul.f32.gmra.mxu0 %v1856
    %v1968 = vpop.f32.mrf.mxu0
    %v1969 = vadd.f32 %v1758, %v1968
    %1970 = vmatmul.f32.gmra.mxu0 %v1859
    %v1971 = vpop.f32.mrf.mxu0
    %v1972 = vadd.f32 %v1763, %v1971
    %1973 = vdwg.mxu0
    %v1974 = vmax.f32 %v1879, 0.0
    %v1975 = vmax.f32 %v1882, 0.0
    %v1976 = vmax.f32 %v1885, 0.0
    %v1977 = vmax.f32 %v1888, 0.0
    %v1978 = vmax.f32 %v1891, 0.0
    %v1979 = vmax.f32 %v1894, 0.0
    %v1980 = vmax.f32 %v1897, 0.0
    %v1981 = vmax.f32 %v1900, 0.0
    %v1982 = vmax.f32 %v1903, 0.0
    %v1983 = vmax.f32 %v1906, 0.0
    %v1984 = vmax.f32 %v1909, 0.0
    %v1985 = vmax.f32 %v1912, 0.0
    %v1986 = vmax.f32 %v1915, 0.0
    %v1987 = vmax.f32 %v1918, 0.0
    %v1988 = vmax.f32 %v1921, 0.0
    %v1989 = vmax.f32 %v1924, 0.0
    %v1990 = vmax.f32 %v1927, 0.0
    %v1991 = vmax.f32 %v1930, 0.0
    %v1992 = vmax.f32 %v1933, 0.0
    %v1993 = vmax.f32 %v1936, 0.0
    %v1994 = vmax.f32 %v1939, 0.0
    %v1995 = vmax.f32 %v1942, 0.0
    %v1996 = vmax.f32 %v1945, 0.0
    %v1997 = vmax.f32 %v1948, 0.0
    %v1998 = vmax.f32 %v1951, 0.0
    %v1999 = vmax.f32 %v1954, 0.0
    %v2000 = vmax.f32 %v1957, 0.0
    %v2001 = vmax.f32 %v1960, 0.0
    %v2002 = vmax.f32 %v1963, 0.0
    %v2003 = vmax.f32 %v1966, 0.0
    %v2004 = vmax.f32 %v1969, 0.0
    %v2005 = vmax.f32 %v1972, 0.0
    %v2006 = vld [vmem:[%s3 + $0x200] sm:$0xff]
    %v2007 = vld [vmem:[%s3 + $0x208] sm:$0xff]
    %v2008 = vld [vmem:[%s3 + $0x210] sm:$0xff]
    %v2009 = vld [vmem:[%s3 + $0x218] sm:$0xff]
    %v2010 = vld [vmem:[%s3 + $0x220] sm:$0xff]
    %v2011 = vld [vmem:[%s3 + $0x228] sm:$0xff]
    %v2012 = vld [vmem:[%s3 + $0x230] sm:$0xff]
    %v2013 = vld [vmem:[%s3 + $0x238] sm:$0xff]
    %v2014 = vld [vmem:[%s3 + $0x240] sm:$0xff]
    %v2015 = vld [vmem:[%s3 + $0x248] sm:$0xff]
    %v2016 = vld [vmem:[%s3 + $0x250] sm:$0xff]
    %v2017 = vld [vmem:[%s3 + $0x258] sm:$0xff]
    %v2018 = vld [vmem:[%s3 + $0x260] sm:$0xff]
    %v2019 = vld [vmem:[%s3 + $0x268] sm:$0xff]
    %v2020 = vld [vmem:[%s3 + $0x270] sm:$0xff]
    %v2021 = vld [vmem:[%s3 + $0x278] sm:$0xff]
    %v2022 = vld [vmem:[%s3 + $0x280] sm:$0xff]
    %v2023 = vld [vmem:[%s3 + $0x288] sm:$0xff]
    %v2024 = vld [vmem:[%s3 + $0x290] sm:$0xff]
    %v2025 = vld [vmem:[%s3 + $0x298] sm:$0xff]
    %v2026 = vld [vmem:[%s3 + $0x2a0] sm:$0xff]
    %v2027 = vld [vmem:[%s3 + $0x2a8] sm:$0xff]
    %v2028 = vld [vmem:[%s3 + $0x2b0] sm:$0xff]
    %v2029 = vld [vmem:[%s3 + $0x2b8] sm:$0xff]
    %v2030 = vld [vmem:[%s3 + $0x2c0] sm:$0xff]
    %v2031 = vld [vmem:[%s3 + $0x2c8] sm:$0xff]
    %v2032 = vld [vmem:[%s3 + $0x2d0] sm:$0xff]
    %v2033 = vld [vmem:[%s3 + $0x2d8] sm:$0xff]
    %v2034 = vld [vmem:[%s3 + $0x2e0] sm:$0xff]
    %v2035 = vld [vmem:[%s3 + $0x2e8] sm:$0xff]
    %v2036 = vld [vmem:[%s3 + $0x2f0] sm:$0xff]
    %v2037 = vld [vmem:[%s3 + $0x2f8] sm:$0xff]
    %2039 = vset.pattern.permute.xlu0 0
    %2040 = vperm.xlu0 %2039, %v2006
    %v2041 = vpop.permute.xlu0 %2040
    %2044 = vset.pattern.permute.xlu0 0
    %2045 = vperm.xlu0 %2044, %v2007
    %v2046 = vpop.permute.xlu0 %2045
    %2049 = vset.pattern.permute.xlu0 0
    %2050 = vperm.xlu0 %2049, %v2008
    %v2051 = vpop.permute.xlu0 %2050
    %2054 = vset.pattern.permute.xlu0 0
    %2055 = vperm.xlu0 %2054, %v2009
    %v2056 = vpop.permute.xlu0 %2055
    %2059 = vset.pattern.permute.xlu0 0
    %2060 = vperm.xlu0 %2059, %v2010
    %v2061 = vpop.permute.xlu0 %2060
    %2064 = vset.pattern.permute.xlu0 0
    %2065 = vperm.xlu0 %2064, %v2011
    %v2066 = vpop.permute.xlu0 %2065
    %2069 = vset.pattern.permute.xlu0 0
    %2070 = vperm.xlu0 %2069, %v2012
    %v2071 = vpop.permute.xlu0 %2070
    %2074 = vset.pattern.permute.xlu0 0
    %2075 = vperm.xlu0 %2074, %v2013
    %v2076 = vpop.permute.xlu0 %2075
    %2079 = vset.pattern.permute.xlu0 0
    %2080 = vperm.xlu0 %2079, %v2014
    %v2081 = vpop.permute.xlu0 %2080
    %2084 = vset.pattern.permute.xlu0 0
    %2085 = vperm.xlu0 %2084, %v2015
    %v2086 = vpop.permute.xlu0 %2085
    %2089 = vset.pattern.permute.xlu0 0
    %2090 = vperm.xlu0 %2089, %v2016
    %v2091 = vpop.permute.xlu0 %2090
    %2094 = vset.pattern.permute.xlu0 0
    %2095 = vperm.xlu0 %2094, %v2017
    %v2096 = vpop.permute.xlu0 %2095
    %2099 = vset.pattern.permute.xlu0 0
    %2100 = vperm.xlu0 %2099, %v2018
    %v2101 = vpop.permute.xlu0 %2100
    %2104 = vset.pattern.permute.xlu0 0
    %2105 = vperm.xlu0 %2104, %v2019
    %v2106 = vpop.permute.xlu0 %2105
    %2109 = vset.pattern.permute.xlu0 0
    %2110 = vperm.xlu0 %2109, %v2020
    %v2111 = vpop.permute.xlu0 %2110
    %2114 = vset.pattern.permute.xlu0 0
    %2115 = vperm.xlu0 %2114, %v2021
    %v2116 = vpop.permute.xlu0 %2115
    %2119 = vset.pattern.permute.xlu0 0
    %2120 = vperm.xlu0 %2119, %v2022
    %v2121 = vpop.permute.xlu0 %2120
    %2124 = vset.pattern.permute.xlu0 0
    %2125 = vperm.xlu0 %2124, %v2023
    %v2126 = vpop.permute.xlu0 %2125
    %2129 = vset.pattern.permute.xlu0 0
    %2130 = vperm.xlu0 %2129, %v2024
    %v2131 = vpop.permute.xlu0 %2130
    %2134 = vset.pattern.permute.xlu0 0
    %2135 = vperm.xlu0 %2134, %v2025
    %v2136 = vpop.permute.xlu0 %2135
    %2139 = vset.pattern.permute.xlu0 0
    %2140 = vperm.xlu0 %2139, %v2026
    %v2141 = vpop.permute.xlu0 %2140
    %2144 = vset.pattern.permute.xlu0 0
    %2145 = vperm.xlu0 %2144, %v2027
    %v2146 = vpop.permute.xlu0 %2145
    %2149 = vset.pattern.permute.xlu0 0
    %2150 = vperm.xlu0 %2149, %v2028
    %v2151 = vpop.permute.xlu0 %2150
    %2154 = vset.pattern.permute.xlu0 0
    %2155 = vperm.xlu0 %2154, %v2029
    %v2156 = vpop.permute.xlu0 %2155
    %2159 = vset.pattern.permute.xlu0 0
    %2160 = vperm.xlu0 %2159, %v2030
    %v2161 = vpop.permute.xlu0 %2160
    %2164 = vset.pattern.permute.xlu0 0
    %2165 = vperm.xlu0 %2164, %v2031
    %v2166 = vpop.permute.xlu0 %2165
    %2169 = vset.pattern.permute.xlu0 0
    %2170 = vperm.xlu0 %2169, %v2032
    %v2171 = vpop.permute.xlu0 %2170
    %2174 = vset.pattern.permute.xlu0 0
    %2175 = vperm.xlu0 %2174, %v2033
    %v2176 = vpop.permute.xlu0 %2175
    %2179 = vset.pattern.permute.xlu0 0
    %2180 = vperm.xlu0 %2179, %v2034
    %v2181 = vpop.permute.xlu0 %2180
    %2184 = vset.pattern.permute.xlu0 0
    %2185 = vperm.xlu0 %2184, %v2035
    %v2186 = vpop.permute.xlu0 %2185
    %2189 = vset.pattern.permute.xlu0 0
    %2190 = vperm.xlu0 %2189, %v2036
    %v2191 = vpop.permute.xlu0 %2190
    %2194 = vset.pattern.permute.xlu0 0
    %2195 = vperm.xlu0 %2194, %v2037
    %v2196 = vpop.permute.xlu0 %2195
    %v2198 = vmul.f32 %v1974, %v2041
    %v2199 = vmul.f32 %v1975, %v2046
    %v2200 = vmul.f32 %v1976, %v2051
    %v2201 = vmul.f32 %v1977, %v2056
    %v2202 = vmul.f32 %v1978, %v2061
    %v2203 = vmul.f32 %v1979, %v2066
    %v2204 = vmul.f32 %v1980, %v2071
    %v2205 = vmul.f32 %v1981, %v2076
    %v2206 = vmul.f32 %v1982, %v2081
    %v2207 = vmul.f32 %v1983, %v2086
    %v2208 = vmul.f32 %v1984, %v2091
    %v2209 = vmul.f32 %v1985, %v2096
    %v2210 = vmul.f32 %v1986, %v2101
    %v2211 = vmul.f32 %v1987, %v2106
    %v2212 = vmul.f32 %v1988, %v2111
    %v2213 = vmul.f32 %v1989, %v2116
    %v2214 = vmul.f32 %v1990, %v2121
    %v2215 = vmul.f32 %v1991, %v2126
    %v2216 = vmul.f32 %v1992, %v2131
    %v2217 = vmul.f32 %v1993, %v2136
    %v2218 = vmul.f32 %v1994, %v2141
    %v2219 = vmul.f32 %v1995, %v2146
    %v2220 = vmul.f32 %v1996, %v2151
    %v2221 = vmul.f32 %v1997, %v2156
    %v2222 = vmul.f32 %v1998, %v2161
    %v2223 = vmul.f32 %v1999, %v2166
    %v2224 = vmul.f32 %v2000, %v2171
    %v2225 = vmul.f32 %v2001, %v2176
    %v2226 = vmul.f32 %v2002, %v2181
    %v2227 = vmul.f32 %v2003, %v2186
    %v2228 = vmul.f32 %v2004, %v2191
    %v2229 = vmul.f32 %v2005, %v2196
    %v2230 = vadd.f32 %v2198, %v2199
    %v2231 = vadd.f32 %v2230, %v2200
    %v2232 = vadd.f32 %v2231, %v2201
    %v2233 = vadd.f32 %v2232, %v2202
    %v2234 = vadd.f32 %v2233, %v2203
    %v2235 = vadd.f32 %v2234, %v2204
    %v2236 = vadd.f32 %v2235, %v2205
    %v2237 = vadd.f32 %v2236, %v2206
    %v2238 = vadd.f32 %v2237, %v2207
    %v2239 = vadd.f32 %v2238, %v2208
    %v2240 = vadd.f32 %v2239, %v2209
    %v2241 = vadd.f32 %v2240, %v2210
    %v2242 = vadd.f32 %v2241, %v2211
    %v2243 = vadd.f32 %v2242, %v2212
    %v2244 = vadd.f32 %v2243, %v2213
    %v2245 = vadd.f32 %v2244, %v2214
    %v2246 = vadd.f32 %v2245, %v2215
    %v2247 = vadd.f32 %v2246, %v2216
    %v2248 = vadd.f32 %v2247, %v2217
    %v2249 = vadd.f32 %v2248, %v2218
    %v2250 = vadd.f32 %v2249, %v2219
    %v2251 = vadd.f32 %v2250, %v2220
    %v2252 = vadd.f32 %v2251, %v2221
    %v2253 = vadd.f32 %v2252, %v2222
    %v2254 = vadd.f32 %v2253, %v2223
    %v2255 = vadd.f32 %v2254, %v2224
    %v2256 = vadd.f32 %v2255, %v2225
    %v2257 = vadd.f32 %v2256, %v2226
    %v2258 = vadd.f32 %v2257, %v2227
    %v2259 = vadd.f32 %v2258, %v2228
    %v2260 = vadd.f32 %v2259, %v2229
    %v2261 = vrot.slane %v2260, 4
    %v2262 = vadd.f32 %v2260, %v2261
    %v2263 = vrot.slane %v2262, 2
    %v2264 = vadd.f32 %v2262, %v2263
    %v2265 = vrot.slane %v2264, 1
    %v2266 = vadd.f32 %v2264, %v2265
    %v2267 = vadd.f32 %v1540, %v2266
    %v2268 = vld [vmem:[%s1 + $0x300] sm:$0xff]
    %v2269 = vld [vmem:[%s1 + $0x308] sm:$0xff]
    %v2270 = vld [vmem:[%s1 + $0x310] sm:$0xff]
    %v2271 = vld [vmem:[%s1 + $0x318] sm:$0xff]
    %v2272 = vld [vmem:[%s1 + $0x320] sm:$0xff]
    %v2273 = vld [vmem:[%s1 + $0x328] sm:$0xff]
    %v2274 = vld [vmem:[%s1 + $0x330] sm:$0xff]
    %v2275 = vld [vmem:[%s1 + $0x338] sm:$0xff]
    %v2276 = vld [vmem:[%s1 + $0x340] sm:$0xff]
    %v2277 = vld [vmem:[%s1 + $0x348] sm:$0xff]
    %v2278 = vld [vmem:[%s1 + $0x350] sm:$0xff]
    %v2279 = vld [vmem:[%s1 + $0x358] sm:$0xff]
    %v2280 = vld [vmem:[%s1 + $0x360] sm:$0xff]
    %v2281 = vld [vmem:[%s1 + $0x368] sm:$0xff]
    %v2282 = vld [vmem:[%s1 + $0x370] sm:$0xff]
    %v2283 = vld [vmem:[%s1 + $0x378] sm:$0xff]
    %v2284 = vld [vmem:[%s1 + $0x380] sm:$0xff]
    %v2285 = vld [vmem:[%s1 + $0x388] sm:$0xff]
    %v2286 = vld [vmem:[%s1 + $0x390] sm:$0xff]
    %v2287 = vld [vmem:[%s1 + $0x398] sm:$0xff]
    %v2288 = vld [vmem:[%s1 + $0x3a0] sm:$0xff]
    %v2289 = vld [vmem:[%s1 + $0x3a8] sm:$0xff]
    %v2290 = vld [vmem:[%s1 + $0x3b0] sm:$0xff]
    %v2291 = vld [vmem:[%s1 + $0x3b8] sm:$0xff]
    %v2292 = vld [vmem:[%s1 + $0x3c0] sm:$0xff]
    %v2293 = vld [vmem:[%s1 + $0x3c8] sm:$0xff]
    %v2294 = vld [vmem:[%s1 + $0x3d0] sm:$0xff]
    %v2295 = vld [vmem:[%s1 + $0x3d8] sm:$0xff]
    %v2296 = vld [vmem:[%s1 + $0x3e0] sm:$0xff]
    %v2297 = vld [vmem:[%s1 + $0x3e8] sm:$0xff]
    %v2298 = vld [vmem:[%s1 + $0x3f0] sm:$0xff]
    %v2299 = vld [vmem:[%s1 + $0x3f8] sm:$0xff]
    %v2300 = vld [vmem:[%s2 + $0x300] sm:$0xff]
    %v2301 = vld [vmem:[%s2 + $0x308] sm:$0xff]
    %v2302 = vld [vmem:[%s2 + $0x310] sm:$0xff]
    %v2303 = vld [vmem:[%s2 + $0x318] sm:$0xff]
    %v2304 = vld [vmem:[%s2 + $0x320] sm:$0xff]
    %v2305 = vld [vmem:[%s2 + $0x328] sm:$0xff]
    %v2306 = vld [vmem:[%s2 + $0x330] sm:$0xff]
    %v2307 = vld [vmem:[%s2 + $0x338] sm:$0xff]
    %v2308 = vld [vmem:[%s2 + $0x340] sm:$0xff]
    %v2309 = vld [vmem:[%s2 + $0x348] sm:$0xff]
    %v2310 = vld [vmem:[%s2 + $0x350] sm:$0xff]
    %v2311 = vld [vmem:[%s2 + $0x358] sm:$0xff]
    %v2312 = vld [vmem:[%s2 + $0x360] sm:$0xff]
    %v2313 = vld [vmem:[%s2 + $0x368] sm:$0xff]
    %v2314 = vld [vmem:[%s2 + $0x370] sm:$0xff]
    %v2315 = vld [vmem:[%s2 + $0x378] sm:$0xff]
    %v2316 = vld [vmem:[%s2 + $0x380] sm:$0xff]
    %v2317 = vld [vmem:[%s2 + $0x388] sm:$0xff]
    %v2318 = vld [vmem:[%s2 + $0x390] sm:$0xff]
    %v2319 = vld [vmem:[%s2 + $0x398] sm:$0xff]
    %v2320 = vld [vmem:[%s2 + $0x3a0] sm:$0xff]
    %v2321 = vld [vmem:[%s2 + $0x3a8] sm:$0xff]
    %v2322 = vld [vmem:[%s2 + $0x3b0] sm:$0xff]
    %v2323 = vld [vmem:[%s2 + $0x3b8] sm:$0xff]
    %v2324 = vld [vmem:[%s2 + $0x3c0] sm:$0xff]
    %v2325 = vld [vmem:[%s2 + $0x3c8] sm:$0xff]
    %v2326 = vld [vmem:[%s2 + $0x3d0] sm:$0xff]
    %v2327 = vld [vmem:[%s2 + $0x3d8] sm:$0xff]
    %v2328 = vld [vmem:[%s2 + $0x3e0] sm:$0xff]
    %v2329 = vld [vmem:[%s2 + $0x3e8] sm:$0xff]
    %v2330 = vld [vmem:[%s2 + $0x3f0] sm:$0xff]
    %v2331 = vld [vmem:[%s2 + $0x3f8] sm:$0xff]
    %2333 = vset.pattern.permute.xlu0 0
    %2334 = vperm.xlu0 %2333, %v2300
    %v2335 = vpop.permute.xlu0 %2334
    %2338 = vset.pattern.permute.xlu0 0
    %2339 = vperm.xlu0 %2338, %v2301
    %v2340 = vpop.permute.xlu0 %2339
    %2343 = vset.pattern.permute.xlu0 0
    %2344 = vperm.xlu0 %2343, %v2302
    %v2345 = vpop.permute.xlu0 %2344
    %2348 = vset.pattern.permute.xlu0 0
    %2349 = vperm.xlu0 %2348, %v2303
    %v2350 = vpop.permute.xlu0 %2349
    %2353 = vset.pattern.permute.xlu0 0
    %2354 = vperm.xlu0 %2353, %v2304
    %v2355 = vpop.permute.xlu0 %2354
    %2358 = vset.pattern.permute.xlu0 0
    %2359 = vperm.xlu0 %2358, %v2305
    %v2360 = vpop.permute.xlu0 %2359
    %2363 = vset.pattern.permute.xlu0 0
    %2364 = vperm.xlu0 %2363, %v2306
    %v2365 = vpop.permute.xlu0 %2364
    %2368 = vset.pattern.permute.xlu0 0
    %2369 = vperm.xlu0 %2368, %v2307
    %v2370 = vpop.permute.xlu0 %2369
    %2373 = vset.pattern.permute.xlu0 0
    %2374 = vperm.xlu0 %2373, %v2308
    %v2375 = vpop.permute.xlu0 %2374
    %2378 = vset.pattern.permute.xlu0 0
    %2379 = vperm.xlu0 %2378, %v2309
    %v2380 = vpop.permute.xlu0 %2379
    %2383 = vset.pattern.permute.xlu0 0
    %2384 = vperm.xlu0 %2383, %v2310
    %v2385 = vpop.permute.xlu0 %2384
    %2388 = vset.pattern.permute.xlu0 0
    %2389 = vperm.xlu0 %2388, %v2311
    %v2390 = vpop.permute.xlu0 %2389
    %2393 = vset.pattern.permute.xlu0 0
    %2394 = vperm.xlu0 %2393, %v2312
    %v2395 = vpop.permute.xlu0 %2394
    %2398 = vset.pattern.permute.xlu0 0
    %2399 = vperm.xlu0 %2398, %v2313
    %v2400 = vpop.permute.xlu0 %2399
    %2403 = vset.pattern.permute.xlu0 0
    %2404 = vperm.xlu0 %2403, %v2314
    %v2405 = vpop.permute.xlu0 %2404
    %2408 = vset.pattern.permute.xlu0 0
    %2409 = vperm.xlu0 %2408, %v2315
    %v2410 = vpop.permute.xlu0 %2409
    %2413 = vset.pattern.permute.xlu0 0
    %2414 = vperm.xlu0 %2413, %v2316
    %v2415 = vpop.permute.xlu0 %2414
    %2418 = vset.pattern.permute.xlu0 0
    %2419 = vperm.xlu0 %2418, %v2317
    %v2420 = vpop.permute.xlu0 %2419
    %2423 = vset.pattern.permute.xlu0 0
    %2424 = vperm.xlu0 %2423, %v2318
    %v2425 = vpop.permute.xlu0 %2424
    %2428 = vset.pattern.permute.xlu0 0
    %2429 = vperm.xlu0 %2428, %v2319
    %v2430 = vpop.permute.xlu0 %2429
    %2433 = vset.pattern.permute.xlu0 0
    %2434 = vperm.xlu0 %2433, %v2320
    %v2435 = vpop.permute.xlu0 %2434
    %2438 = vset.pattern.permute.xlu0 0
    %2439 = vperm.xlu0 %2438, %v2321
    %v2440 = vpop.permute.xlu0 %2439
    %2443 = vset.pattern.permute.xlu0 0
    %2444 = vperm.xlu0 %2443, %v2322
    %v2445 = vpop.permute.xlu0 %2444
    %2448 = vset.pattern.permute.xlu0 0
    %2449 = vperm.xlu0 %2448, %v2323
    %v2450 = vpop.permute.xlu0 %2449
    %2453 = vset.pattern.permute.xlu0 0
    %2454 = vperm.xlu0 %2453, %v2324
    %v2455 = vpop.permute.xlu0 %2454
    %2458 = vset.pattern.permute.xlu0 0
    %2459 = vperm.xlu0 %2458, %v2325
    %v2460 = vpop.permute.xlu0 %2459
    %2463 = vset.pattern.permute.xlu0 0
    %2464 = vperm.xlu0 %2463, %v2326
    %v2465 = vpop.permute.xlu0 %2464
    %2468 = vset.pattern.permute.xlu0 0
    %2469 = vperm.xlu0 %2468, %v2327
    %v2470 = vpop.permute.xlu0 %2469
    %2473 = vset.pattern.permute.xlu0 0
    %2474 = vperm.xlu0 %2473, %v2328
    %v2475 = vpop.permute.xlu0 %2474
    %2478 = vset.pattern.permute.xlu0 0
    %2479 = vperm.xlu0 %2478, %v2329
    %v2480 = vpop.permute.xlu0 %2479
    %2483 = vset.pattern.permute.xlu0 0
    %2484 = vperm.xlu0 %2483, %v2330
    %v2485 = vpop.permute.xlu0 %2484
    %2488 = vset.pattern.permute.xlu0 0
    %2489 = vperm.xlu0 %2488, %v2331
    %v2490 = vpop.permute.xlu0 %2489
    %v2493 = vsel %vm262, %v2268, 0
    %v2496 = vsel %vm262, %v2269, 0
    %v2499 = vsel %vm262, %v2270, 0
    %v2502 = vsel %vm262, %v2271, 0
    %v2505 = vsel %vm262, %v2272, 0
    %v2508 = vsel %vm262, %v2273, 0
    %v2511 = vsel %vm262, %v2274, 0
    %v2514 = vsel %vm262, %v2275, 0
    %v2517 = vsel %vm262, %v2276, 0
    %v2520 = vsel %vm262, %v2277, 0
    %v2523 = vsel %vm262, %v2278, 0
    %v2526 = vsel %vm262, %v2279, 0
    %v2529 = vsel %vm262, %v2280, 0
    %v2532 = vsel %vm262, %v2281, 0
    %v2535 = vsel %vm262, %v2282, 0
    %v2538 = vsel %vm262, %v2283, 0
    %v2541 = vsel %vm262, %v2284, 0
    %v2544 = vsel %vm262, %v2285, 0
    %v2547 = vsel %vm262, %v2286, 0
    %v2550 = vsel %vm262, %v2287, 0
    %v2553 = vsel %vm262, %v2288, 0
    %v2556 = vsel %vm262, %v2289, 0
    %v2559 = vsel %vm262, %v2290, 0
    %v2562 = vsel %vm262, %v2291, 0
    %v2565 = vsel %vm262, %v2292, 0
    %v2568 = vsel %vm262, %v2293, 0
    %v2571 = vsel %vm262, %v2294, 0
    %v2574 = vsel %vm262, %v2295, 0
    %v2577 = vsel %vm262, %v2296, 0
    %v2580 = vsel %vm262, %v2297, 0
    %v2583 = vsel %vm262, %v2298, 0
    %v2586 = vsel %vm262, %v2299, 0
    %2588 = vmatpush.xpose.msra.mxu0 %v405
    %2589 = vmatpush.xpose.msra.mxu0 %v402
    %2590 = vmatpush.xpose.msra.mxu0 %v399
    %2591 = vmatpush.xpose.msra.mxu0 %v396
    %2592 = vmatpush.xpose.msra.mxu0 %v393
    %2593 = vmatpush.xpose.msra.mxu0 %v390
    %2594 = vmatpush.xpose.msra.mxu0 %v387
    %2595 = vmatpush.xpose.msra.mxu0 %v384
    %2596 = vmatpush.xpose.msra.mxu0 %v381
    %2597 = vmatpush.xpose.msra.mxu0 %v378
    %2598 = vmatpush.xpose.msra.mxu0 %v375
    %2599 = vmatpush.xpose.msra.mxu0 %v372
    %2600 = vmatpush.xpose.msra.mxu0 %v369
    %2601 = vmatpush.xpose.msra.mxu0 %v366
    %2602 = vmatpush.xpose.msra.mxu0 %v363
    %2603 = vmatpush.xpose.msra.mxu0 %v360
    %2604 = vmatmul.f32.gmra.mxu0 %v2493
    %v2605 = vpop.f32.mrf.mxu0
    %v2606 = vadd.f32 %v2335, %v2605
    %2607 = vmatmul.f32.gmra.mxu0 %v2496
    %v2608 = vpop.f32.mrf.mxu0
    %v2609 = vadd.f32 %v2340, %v2608
    %2610 = vmatmul.f32.gmra.mxu0 %v2499
    %v2611 = vpop.f32.mrf.mxu0
    %v2612 = vadd.f32 %v2345, %v2611
    %2613 = vmatmul.f32.gmra.mxu0 %v2502
    %v2614 = vpop.f32.mrf.mxu0
    %v2615 = vadd.f32 %v2350, %v2614
    %2616 = vmatmul.f32.gmra.mxu0 %v2505
    %v2617 = vpop.f32.mrf.mxu0
    %v2618 = vadd.f32 %v2355, %v2617
    %2619 = vmatmul.f32.gmra.mxu0 %v2508
    %v2620 = vpop.f32.mrf.mxu0
    %v2621 = vadd.f32 %v2360, %v2620
    %2622 = vmatmul.f32.gmra.mxu0 %v2511
    %v2623 = vpop.f32.mrf.mxu0
    %v2624 = vadd.f32 %v2365, %v2623
    %2625 = vmatmul.f32.gmra.mxu0 %v2514
    %v2626 = vpop.f32.mrf.mxu0
    %v2627 = vadd.f32 %v2370, %v2626
    %2628 = vmatmul.f32.gmra.mxu0 %v2517
    %v2629 = vpop.f32.mrf.mxu0
    %v2630 = vadd.f32 %v2375, %v2629
    %2631 = vmatmul.f32.gmra.mxu0 %v2520
    %v2632 = vpop.f32.mrf.mxu0
    %v2633 = vadd.f32 %v2380, %v2632
    %2634 = vmatmul.f32.gmra.mxu0 %v2523
    %v2635 = vpop.f32.mrf.mxu0
    %v2636 = vadd.f32 %v2385, %v2635
    %2637 = vmatmul.f32.gmra.mxu0 %v2526
    %v2638 = vpop.f32.mrf.mxu0
    %v2639 = vadd.f32 %v2390, %v2638
    %2640 = vmatmul.f32.gmra.mxu0 %v2529
    %v2641 = vpop.f32.mrf.mxu0
    %v2642 = vadd.f32 %v2395, %v2641
    %2643 = vmatmul.f32.gmra.mxu0 %v2532
    %v2644 = vpop.f32.mrf.mxu0
    %v2645 = vadd.f32 %v2400, %v2644
    %2646 = vmatmul.f32.gmra.mxu0 %v2535
    %v2647 = vpop.f32.mrf.mxu0
    %v2648 = vadd.f32 %v2405, %v2647
    %2649 = vmatmul.f32.gmra.mxu0 %v2538
    %v2650 = vpop.f32.mrf.mxu0
    %v2651 = vadd.f32 %v2410, %v2650
    %2652 = vmatmul.f32.gmra.mxu0 %v2541
    %v2653 = vpop.f32.mrf.mxu0
    %v2654 = vadd.f32 %v2415, %v2653
    %2655 = vmatmul.f32.gmra.mxu0 %v2544
    %v2656 = vpop.f32.mrf.mxu0
    %v2657 = vadd.f32 %v2420, %v2656
    %2658 = vmatmul.f32.gmra.mxu0 %v2547
    %v2659 = vpop.f32.mrf.mxu0
    %v2660 = vadd.f32 %v2425, %v2659
    %2661 = vmatmul.f32.gmra.mxu0 %v2550
    %v2662 = vpop.f32.mrf.mxu0
    %v2663 = vadd.f32 %v2430, %v2662
    %2664 = vmatmul.f32.gmra.mxu0 %v2553
    %v2665 = vpop.f32.mrf.mxu0
    %v2666 = vadd.f32 %v2435, %v2665
    %2667 = vmatmul.f32.gmra.mxu0 %v2556
    %v2668 = vpop.f32.mrf.mxu0
    %v2669 = vadd.f32 %v2440, %v2668
    %2670 = vmatmul.f32.gmra.mxu0 %v2559
    %v2671 = vpop.f32.mrf.mxu0
    %v2672 = vadd.f32 %v2445, %v2671
    %2673 = vmatmul.f32.gmra.mxu0 %v2562
    %v2674 = vpop.f32.mrf.mxu0
    %v2675 = vadd.f32 %v2450, %v2674
    %2676 = vmatmul.f32.gmra.mxu0 %v2565
    %v2677 = vpop.f32.mrf.mxu0
    %v2678 = vadd.f32 %v2455, %v2677
    %2679 = vmatmul.f32.gmra.mxu0 %v2568
    %v2680 = vpop.f32.mrf.mxu0
    %v2681 = vadd.f32 %v2460, %v2680
    %2682 = vmatmul.f32.gmra.mxu0 %v2571
    %v2683 = vpop.f32.mrf.mxu0
    %v2684 = vadd.f32 %v2465, %v2683
    %2685 = vmatmul.f32.gmra.mxu0 %v2574
    %v2686 = vpop.f32.mrf.mxu0
    %v2687 = vadd.f32 %v2470, %v2686
    %2688 = vmatmul.f32.gmra.mxu0 %v2577
    %v2689 = vpop.f32.mrf.mxu0
    %v2690 = vadd.f32 %v2475, %v2689
    %2691 = vmatmul.f32.gmra.mxu0 %v2580
    %v2692 = vpop.f32.mrf.mxu0
    %v2693 = vadd.f32 %v2480, %v2692
    %2694 = vmatmul.f32.gmra.mxu0 %v2583
    %v2695 = vpop.f32.mrf.mxu0
    %v2696 = vadd.f32 %v2485, %v2695
    %2697 = vmatmul.f32.gmra.mxu0 %v2586
    %v2698 = vpop.f32.mrf.mxu0
    %v2699 = vadd.f32 %v2490, %v2698
    %2700 = vdwg.mxu0
    %v2701 = vmax.f32 %v2606, 0.0
    %v2702 = vmax.f32 %v2609, 0.0
    %v2703 = vmax.f32 %v2612, 0.0
    %v2704 = vmax.f32 %v2615, 0.0
    %v2705 = vmax.f32 %v2618, 0.0
    %v2706 = vmax.f32 %v2621, 0.0
    %v2707 = vmax.f32 %v2624, 0.0
    %v2708 = vmax.f32 %v2627, 0.0
    %v2709 = vmax.f32 %v2630, 0.0
    %v2710 = vmax.f32 %v2633, 0.0
    %v2711 = vmax.f32 %v2636, 0.0
    %v2712 = vmax.f32 %v2639, 0.0
    %v2713 = vmax.f32 %v2642, 0.0
    %v2714 = vmax.f32 %v2645, 0.0
    %v2715 = vmax.f32 %v2648, 0.0
    %v2716 = vmax.f32 %v2651, 0.0
    %v2717 = vmax.f32 %v2654, 0.0
    %v2718 = vmax.f32 %v2657, 0.0
    %v2719 = vmax.f32 %v2660, 0.0
    %v2720 = vmax.f32 %v2663, 0.0
    %v2721 = vmax.f32 %v2666, 0.0
    %v2722 = vmax.f32 %v2669, 0.0
    %v2723 = vmax.f32 %v2672, 0.0
    %v2724 = vmax.f32 %v2675, 0.0
    %v2725 = vmax.f32 %v2678, 0.0
    %v2726 = vmax.f32 %v2681, 0.0
    %v2727 = vmax.f32 %v2684, 0.0
    %v2728 = vmax.f32 %v2687, 0.0
    %v2729 = vmax.f32 %v2690, 0.0
    %v2730 = vmax.f32 %v2693, 0.0
    %v2731 = vmax.f32 %v2696, 0.0
    %v2732 = vmax.f32 %v2699, 0.0
    %v2733 = vld [vmem:[%s3 + $0x300] sm:$0xff]
    %v2734 = vld [vmem:[%s3 + $0x308] sm:$0xff]
    %v2735 = vld [vmem:[%s3 + $0x310] sm:$0xff]
    %v2736 = vld [vmem:[%s3 + $0x318] sm:$0xff]
    %v2737 = vld [vmem:[%s3 + $0x320] sm:$0xff]
    %v2738 = vld [vmem:[%s3 + $0x328] sm:$0xff]
    %v2739 = vld [vmem:[%s3 + $0x330] sm:$0xff]
    %v2740 = vld [vmem:[%s3 + $0x338] sm:$0xff]
    %v2741 = vld [vmem:[%s3 + $0x340] sm:$0xff]
    %v2742 = vld [vmem:[%s3 + $0x348] sm:$0xff]
    %v2743 = vld [vmem:[%s3 + $0x350] sm:$0xff]
    %v2744 = vld [vmem:[%s3 + $0x358] sm:$0xff]
    %v2745 = vld [vmem:[%s3 + $0x360] sm:$0xff]
    %v2746 = vld [vmem:[%s3 + $0x368] sm:$0xff]
    %v2747 = vld [vmem:[%s3 + $0x370] sm:$0xff]
    %v2748 = vld [vmem:[%s3 + $0x378] sm:$0xff]
    %v2749 = vld [vmem:[%s3 + $0x380] sm:$0xff]
    %v2750 = vld [vmem:[%s3 + $0x388] sm:$0xff]
    %v2751 = vld [vmem:[%s3 + $0x390] sm:$0xff]
    %v2752 = vld [vmem:[%s3 + $0x398] sm:$0xff]
    %v2753 = vld [vmem:[%s3 + $0x3a0] sm:$0xff]
    %v2754 = vld [vmem:[%s3 + $0x3a8] sm:$0xff]
    %v2755 = vld [vmem:[%s3 + $0x3b0] sm:$0xff]
    %v2756 = vld [vmem:[%s3 + $0x3b8] sm:$0xff]
    %v2757 = vld [vmem:[%s3 + $0x3c0] sm:$0xff]
    %v2758 = vld [vmem:[%s3 + $0x3c8] sm:$0xff]
    %v2759 = vld [vmem:[%s3 + $0x3d0] sm:$0xff]
    %v2760 = vld [vmem:[%s3 + $0x3d8] sm:$0xff]
    %v2761 = vld [vmem:[%s3 + $0x3e0] sm:$0xff]
    %v2762 = vld [vmem:[%s3 + $0x3e8] sm:$0xff]
    %v2763 = vld [vmem:[%s3 + $0x3f0] sm:$0xff]
    %v2764 = vld [vmem:[%s3 + $0x3f8] sm:$0xff]
    %2766 = vset.pattern.permute.xlu0 0
    %2767 = vperm.xlu0 %2766, %v2733
    %v2768 = vpop.permute.xlu0 %2767
    %2771 = vset.pattern.permute.xlu0 0
    %2772 = vperm.xlu0 %2771, %v2734
    %v2773 = vpop.permute.xlu0 %2772
    %2776 = vset.pattern.permute.xlu0 0
    %2777 = vperm.xlu0 %2776, %v2735
    %v2778 = vpop.permute.xlu0 %2777
    %2781 = vset.pattern.permute.xlu0 0
    %2782 = vperm.xlu0 %2781, %v2736
    %v2783 = vpop.permute.xlu0 %2782
    %2786 = vset.pattern.permute.xlu0 0
    %2787 = vperm.xlu0 %2786, %v2737
    %v2788 = vpop.permute.xlu0 %2787
    %2791 = vset.pattern.permute.xlu0 0
    %2792 = vperm.xlu0 %2791, %v2738
    %v2793 = vpop.permute.xlu0 %2792
    %2796 = vset.pattern.permute.xlu0 0
    %2797 = vperm.xlu0 %2796, %v2739
    %v2798 = vpop.permute.xlu0 %2797
    %2801 = vset.pattern.permute.xlu0 0
    %2802 = vperm.xlu0 %2801, %v2740
    %v2803 = vpop.permute.xlu0 %2802
    %2806 = vset.pattern.permute.xlu0 0
    %2807 = vperm.xlu0 %2806, %v2741
    %v2808 = vpop.permute.xlu0 %2807
    %2811 = vset.pattern.permute.xlu0 0
    %2812 = vperm.xlu0 %2811, %v2742
    %v2813 = vpop.permute.xlu0 %2812
    %2816 = vset.pattern.permute.xlu0 0
    %2817 = vperm.xlu0 %2816, %v2743
    %v2818 = vpop.permute.xlu0 %2817
    %2821 = vset.pattern.permute.xlu0 0
    %2822 = vperm.xlu0 %2821, %v2744
    %v2823 = vpop.permute.xlu0 %2822
    %2826 = vset.pattern.permute.xlu0 0
    %2827 = vperm.xlu0 %2826, %v2745
    %v2828 = vpop.permute.xlu0 %2827
    %2831 = vset.pattern.permute.xlu0 0
    %2832 = vperm.xlu0 %2831, %v2746
    %v2833 = vpop.permute.xlu0 %2832
    %2836 = vset.pattern.permute.xlu0 0
    %2837 = vperm.xlu0 %2836, %v2747
    %v2838 = vpop.permute.xlu0 %2837
    %2841 = vset.pattern.permute.xlu0 0
    %2842 = vperm.xlu0 %2841, %v2748
    %v2843 = vpop.permute.xlu0 %2842
    %2846 = vset.pattern.permute.xlu0 0
    %2847 = vperm.xlu0 %2846, %v2749
    %v2848 = vpop.permute.xlu0 %2847
    %2851 = vset.pattern.permute.xlu0 0
    %2852 = vperm.xlu0 %2851, %v2750
    %v2853 = vpop.permute.xlu0 %2852
    %2856 = vset.pattern.permute.xlu0 0
    %2857 = vperm.xlu0 %2856, %v2751
    %v2858 = vpop.permute.xlu0 %2857
    %2861 = vset.pattern.permute.xlu0 0
    %2862 = vperm.xlu0 %2861, %v2752
    %v2863 = vpop.permute.xlu0 %2862
    %2866 = vset.pattern.permute.xlu0 0
    %2867 = vperm.xlu0 %2866, %v2753
    %v2868 = vpop.permute.xlu0 %2867
    %2871 = vset.pattern.permute.xlu0 0
    %2872 = vperm.xlu0 %2871, %v2754
    %v2873 = vpop.permute.xlu0 %2872
    %2876 = vset.pattern.permute.xlu0 0
    %2877 = vperm.xlu0 %2876, %v2755
    %v2878 = vpop.permute.xlu0 %2877
    %2881 = vset.pattern.permute.xlu0 0
    %2882 = vperm.xlu0 %2881, %v2756
    %v2883 = vpop.permute.xlu0 %2882
    %2886 = vset.pattern.permute.xlu0 0
    %2887 = vperm.xlu0 %2886, %v2757
    %v2888 = vpop.permute.xlu0 %2887
    %2891 = vset.pattern.permute.xlu0 0
    %2892 = vperm.xlu0 %2891, %v2758
    %v2893 = vpop.permute.xlu0 %2892
    %2896 = vset.pattern.permute.xlu0 0
    %2897 = vperm.xlu0 %2896, %v2759
    %v2898 = vpop.permute.xlu0 %2897
    %2901 = vset.pattern.permute.xlu0 0
    %2902 = vperm.xlu0 %2901, %v2760
    %v2903 = vpop.permute.xlu0 %2902
    %2906 = vset.pattern.permute.xlu0 0
    %2907 = vperm.xlu0 %2906, %v2761
    %v2908 = vpop.permute.xlu0 %2907
    %2911 = vset.pattern.permute.xlu0 0
    %2912 = vperm.xlu0 %2911, %v2762
    %v2913 = vpop.permute.xlu0 %2912
    %2916 = vset.pattern.permute.xlu0 0
    %2917 = vperm.xlu0 %2916, %v2763
    %v2918 = vpop.permute.xlu0 %2917
    %2921 = vset.pattern.permute.xlu0 0
    %2922 = vperm.xlu0 %2921, %v2764
    %v2923 = vpop.permute.xlu0 %2922
    %v2925 = vmul.f32 %v2701, %v2768
    %v2926 = vmul.f32 %v2702, %v2773
    %v2927 = vmul.f32 %v2703, %v2778
    %v2928 = vmul.f32 %v2704, %v2783
    %v2929 = vmul.f32 %v2705, %v2788
    %v2930 = vmul.f32 %v2706, %v2793
    %v2931 = vmul.f32 %v2707, %v2798
    %v2932 = vmul.f32 %v2708, %v2803
    %v2933 = vmul.f32 %v2709, %v2808
    %v2934 = vmul.f32 %v2710, %v2813
    %v2935 = vmul.f32 %v2711, %v2818
    %v2936 = vmul.f32 %v2712, %v2823
    %v2937 = vmul.f32 %v2713, %v2828
    %v2938 = vmul.f32 %v2714, %v2833
    %v2939 = vmul.f32 %v2715, %v2838
    %v2940 = vmul.f32 %v2716, %v2843
    %v2941 = vmul.f32 %v2717, %v2848
    %v2942 = vmul.f32 %v2718, %v2853
    %v2943 = vmul.f32 %v2719, %v2858
    %v2944 = vmul.f32 %v2720, %v2863
    %v2945 = vmul.f32 %v2721, %v2868
    %v2946 = vmul.f32 %v2722, %v2873
    %v2947 = vmul.f32 %v2723, %v2878
    %v2948 = vmul.f32 %v2724, %v2883
    %v2949 = vmul.f32 %v2725, %v2888
    %v2950 = vmul.f32 %v2726, %v2893
    %v2951 = vmul.f32 %v2727, %v2898
    %v2952 = vmul.f32 %v2728, %v2903
    %v2953 = vmul.f32 %v2729, %v2908
    %v2954 = vmul.f32 %v2730, %v2913
    %v2955 = vmul.f32 %v2731, %v2918
    %v2956 = vmul.f32 %v2732, %v2923
    %v2957 = vadd.f32 %v2925, %v2926
    %v2958 = vadd.f32 %v2957, %v2927
    %v2959 = vadd.f32 %v2958, %v2928
    %v2960 = vadd.f32 %v2959, %v2929
    %v2961 = vadd.f32 %v2960, %v2930
    %v2962 = vadd.f32 %v2961, %v2931
    %v2963 = vadd.f32 %v2962, %v2932
    %v2964 = vadd.f32 %v2963, %v2933
    %v2965 = vadd.f32 %v2964, %v2934
    %v2966 = vadd.f32 %v2965, %v2935
    %v2967 = vadd.f32 %v2966, %v2936
    %v2968 = vadd.f32 %v2967, %v2937
    %v2969 = vadd.f32 %v2968, %v2938
    %v2970 = vadd.f32 %v2969, %v2939
    %v2971 = vadd.f32 %v2970, %v2940
    %v2972 = vadd.f32 %v2971, %v2941
    %v2973 = vadd.f32 %v2972, %v2942
    %v2974 = vadd.f32 %v2973, %v2943
    %v2975 = vadd.f32 %v2974, %v2944
    %v2976 = vadd.f32 %v2975, %v2945
    %v2977 = vadd.f32 %v2976, %v2946
    %v2978 = vadd.f32 %v2977, %v2947
    %v2979 = vadd.f32 %v2978, %v2948
    %v2980 = vadd.f32 %v2979, %v2949
    %v2981 = vadd.f32 %v2980, %v2950
    %v2982 = vadd.f32 %v2981, %v2951
    %v2983 = vadd.f32 %v2982, %v2952
    %v2984 = vadd.f32 %v2983, %v2953
    %v2985 = vadd.f32 %v2984, %v2954
    %v2986 = vadd.f32 %v2985, %v2955
    %v2987 = vadd.f32 %v2986, %v2956
    %v2988 = vrot.slane %v2987, 4
    %v2989 = vadd.f32 %v2987, %v2988
    %v2990 = vrot.slane %v2989, 2
    %v2991 = vadd.f32 %v2989, %v2990
    %v2992 = vrot.slane %v2991, 1
    %v2993 = vadd.f32 %v2991, %v2992
    %v2994 = vadd.f32 %v2267, %v2993
    %s2995 = sld [smem:[#allocation2]]
    %v2996 = vstv %s2995
    %v2997 = vadd.f32 %v2994, %v2996
    %2998 = vst [vmem:[#allocation3] sm:$0x1] %v2997
    // Predicated region
    $region22: #{tpu_custom_call.1} parent=1 // pred_check
      _
    $region23: #{tpu_custom_call.1} parent=1 // pred_check_branch
      %3000 = sbr.rel (0) target = $region25
    $region24: #{tpu_custom_call.1} parent=1 // pred_region
      %3002 = vsyncadd [#allocation4], 0
      %s3004 = sshll.u32 [#allocation3], 4
      %s3005 = int_to_ptr.vmem [resolvable:$true] %s3004
      %s3006 = sshll.u32 %s5, 4
      %s3007 = int_to_ptr.hbm [resolvable:$true] %s3006
      %3009 = dma.vmem_to_hbm [thread:$0]  %s3005, 16, %s3007, [#allocation4]
    $region25: #{tpu_custom_call.1} parent=1 // pred_fallthru
      _
    // Predicated region
    $region26: #{tpu_custom_call.1} parent=1 // pred_check
      _
    $region27: #{tpu_custom_call.1} parent=1 // pred_check_branch
      %3011 = sbr.rel (0) target = $region29
    $region28: #{tpu_custom_call.1} parent=1 // pred_region
      %3013 = dma.done [#allocation4], 16
    $region29: #{tpu_custom_call.1} parent=1 // pred_fallthru
      _
    %3014 = vsyncpa [#allocation4], 1

</llo_original>
